<compile_context>
chip_gen: v7x
topology: tpu7x:2x2x1
jax: 0.10.0
libtpu: 0.0.40
codegen_flags: <defaults>
</compile_context>

<pallas_src>
import functools
import math

import numpy as np
import jax
import jax.numpy as jnp
from jax.experimental import pallas as pl
from jax.experimental.pallas import tpu as pltpu


# bf16 MXU operands (f32 accumulation kept via preferred_element_type).
MATMUL_DTYPE = jnp.bfloat16

# Safe on v7x (64 MiB physical VMEM); tiles below use far less than this.
# On v5e/v6e (128 MiB physical) this can be raised to 64-96 MiB together with
# larger tm/tn/tk if the model is scaled up.
VMEM_LIMIT_BYTES = 48 * 1024 * 1024

LN_EPS = 1e-5


def _round_up(x, m):
    return (x + m - 1) // m * m


def _pick_tile(preferred, padded_dim, unit):
    """Largest multiple of `unit` <= preferred that divides padded_dim."""
    t = min(_round_up(preferred, unit), padded_dim)
    while padded_dim % t != 0:
        t -= unit
    return t


# ----------------------------------------------------------------------------
# Packed (pre-padded, pre-cast) linear / layernorm parameters
# ----------------------------------------------------------------------------
@jax.tree_util.register_pytree_node_class
class PackedLinear:
    """Weight pre-padded to 128-lane multiples and pre-cast to bf16 at init."""

    def __init__(self, w, b, k, n):
        self.w, self.b, self.k, self.n = w, b, k, n

    def tree_flatten(self):
        return (self.w, self.b), (self.k, self.n)

    @classmethod
    def tree_unflatten(cls, aux, children):
        w, b = children
        k, n = aux
        return cls(w, b, k, n)


def pack_linear(w, b):
    K, N = w.shape
    Kp, Np = _round_up(K, 128), _round_up(N, 128)
    wp = jnp.zeros((Kp, Np), MATMUL_DTYPE).at[:K, :N].set(w.astype(MATMUL_DTYPE))
    bp = jnp.zeros((1, Np), jnp.float32).at[0, :N].set(b.astype(jnp.float32))
    return PackedLinear(wp, bp, K, N)


def pack_ln(gamma, beta):
    (N,) = gamma.shape
    Np = _round_up(N, 128)
    g = jnp.zeros((1, Np), jnp.float32).at[0, :N].set(gamma.astype(jnp.float32))
    b = jnp.zeros((1, Np), jnp.float32).at[0, :N].set(beta.astype(jnp.float32))
    return {"g": g, "b": b}


# ----------------------------------------------------------------------------
# Tiled linear: GEMM + bias + optional activation / residual-add / LayerNorm,
# all fused in the K-axis epilogue.
# ----------------------------------------------------------------------------
def _linear_kernel(*refs, activation, fuse_ln, has_res, inv_n):
    x_ref, w_ref, b_ref = refs[0], refs[1], refs[2]
    idx = 3
    res_ref = None
    if has_res:
        res_ref = refs[idx]
        idx += 1
    if fuse_ln:
        g_ref, beta_ref = refs[idx], refs[idx + 1]
        idx += 2
    o_ref, acc_ref = refs[idx], refs[idx + 1]

    k = pl.program_id(2)

    @pl.when(k == 0)
    def _():
        acc_ref[...] = jnp.zeros_like(acc_ref)

    acc_ref[...] += jnp.dot(x_ref[...], w_ref[...],
                            preferred_element_type=jnp.float32)

    @pl.when(k == pl.num_programs(2) - 1)
    def _():
        z = acc_ref[...] + b_ref[...]
        if activation == "relu":
            z = jnp.maximum(z, 0.0)
        elif activation == "tanh":
            z = jnp.tanh(z)
        if has_res:
            z = z + res_ref[...].astype(jnp.float32)
        if fuse_ln:
            # Padded N columns of z are exactly zero (zero-padded weight
            # columns, bias and residual), so plain row sums divided by the
            # LOGICAL width give exact statistics; padded gamma/beta are zero
            # so padded output columns stay zero.
            mean = jnp.sum(z, axis=-1, keepdims=True) * inv_n
            mean_sq = jnp.sum(z * z, axis=-1, keepdims=True) * inv_n
            var = mean_sq - mean * mean
            z = (z - mean) * jax.lax.rsqrt(var + LN_EPS)
            z = z * g_ref[...] + beta_ref[...]
        o_ref[...] = z.astype(o_ref.dtype)


def linear(x, lin, activation=None, *, residual=None, ln=None,
           out_dtype=MATMUL_DTYPE, tm=256, tn=256, tk=512):
    """y = LN_opt( act(x @ w + b) + residual_opt ), weights from PackedLinear."""
    orig = x.shape
    K, N = lin.k, lin.n
    M = int(np.prod(orig[:-1]))
    w2, b2 = lin.w, lin.b
    Kp, Np = w2.shape
    fuse_ln = ln is not None
    has_res = residual is not None

    x2 = x.reshape(M, K)
    if x2.dtype != MATMUL_DTYPE:
        x2 = x2.astype(MATMUL_DTYPE)

    tm = min(tm, _round_up(M, 8))
    Mp = _round_up(M, tm)
    tk = _pick_tile(tk, Kp, 128)   # tk always divides padded K -> no wasted MXU work
    # For fused LayerNorm the full output row must sit in one tile (row stats).
    tn = Np if fuse_ln else _pick_tile(tn, Np, 128)

    if (Mp, Kp) != (M, K):
        x2 = jnp.pad(x2, ((0, Mp - M), (0, Kp - K)))

    inputs = [x2, w2, b2]
    in_specs = [
        pl.BlockSpec((tm, tk), lambda i, j, k: (i, k)),
        pl.BlockSpec((tk, tn), lambda i, j, k: (k, j)),
        pl.BlockSpec((1, tn), lambda i, j, k: (0, j)),
    ]
    if has_res:
        r2 = residual.reshape(M, N)
        if r2.dtype != MATMUL_DTYPE:
            r2 = r2.astype(MATMUL_DTYPE)
        if (Mp, Np) != (M, N):
            r2 = jnp.pad(r2, ((0, Mp - M), (0, Np - N)))
        inputs.append(r2)
        in_specs.append(pl.BlockSpec((tm, tn), lambda i, j, k: (i, j)))
    if fuse_ln:
        inputs += [ln["g"], ln["b"]]
        in_specs += [pl.BlockSpec((1, tn), lambda i, j, k: (0, j)),
                     pl.BlockSpec((1, tn), lambda i, j, k: (0, j))]

    grid = (Mp // tm, Np // tn, Kp // tk)
    in_bytes = jnp.dtype(MATMUL_DTYPE).itemsize
    out_bytes = jnp.dtype(out_dtype).itemsize
    cost = pl.CostEstimate(
        flops=int(2 * M * N * K),
        transcendentals=int(M * N) if activation == "tanh" else 0,
        bytes_accessed=int(in_bytes * (M * K + K * N)
                           + out_bytes * M * N + 4 * N
                           + (in_bytes * M * N if has_res else 0)
                           + (8 * N if fuse_ln else 0)))

    out = pl.pallas_call(
        functools.partial(_linear_kernel, activation=activation,
                          fuse_ln=fuse_ln, has_res=has_res, inv_n=1.0 / N),
        out_shape=jax.ShapeDtypeStruct((Mp, Np), out_dtype),
        grid_spec=pltpu.PrefetchScalarGridSpec(
            num_scalar_prefetch=0,
            grid=grid,
            in_specs=in_specs,
            out_specs=pl.BlockSpec((tm, tn), lambda i, j, k: (i, j)),
            scratch_shapes=[pltpu.VMEM((tm, tn), jnp.float32)],
        ),
        compiler_params=pltpu.CompilerParams(
            dimension_semantics=("parallel", "parallel", "arbitrary"),
            vmem_limit_bytes=VMEM_LIMIT_BYTES),
        cost_estimate=cost,
    )(*inputs)

    return out[:M, :N].reshape(orig[:-1] + (N,))


# ----------------------------------------------------------------------------
# Multi-head masked attention: one grid step per batch, all heads in-kernel.
# Consumes the fused Q|K|V projection directly (no wrapper jnp.split copies).
# ----------------------------------------------------------------------------
def _attn_kernel(vl_ref, qkv_ref, o_ref, *, num_heads, head_dim, scale):
    b = pl.program_id(0)
    vl = vl_ref[b]                        # valid length for this batch
    qkv = qkv_ref[0]                      # (S, 3*nh*D), bf16
    S = qkv.shape[0]
    HD = num_heads * head_dim

    q = qkv[:, :HD] * scale               # scale hoisted: one VPU pass for all heads
    k = qkv[:, HD:2 * HD]
    v = qkv[:, 2 * HD:3 * HD]

    key_idx = jax.lax.broadcasted_iota(jnp.int32, (S, S), 1)
    mask = key_idx < vl                   # shared across heads
    neg = jnp.float32(-1e6)               # d2l masked_softmax fill value

    # TODO(synk): a head-major (B, nh, S, D) HBM layout (permuted Wqkv columns /
    # Wo rows) would remove the sub-128-lane per-head slices below; kept in the
    # (B, S, nh*D) layout for d2l parity and robust lowering at small head_dim.
    outs = []
    for h in range(num_heads):            # static unroll, nh is small
        lo = h * head_dim
        qh = q[:, lo:lo + head_dim]
        kh = k[:, lo:lo + head_dim]
        vh = v[:, lo:lo + head_dim]
        s = jax.lax.dot_general(qh, kh, (((1,), (1,)), ((), ())),
                                preferred_element_type=jnp.float32)
        s = jnp.where(mask, s, neg)
        s = s - jnp.max(s, axis=-1, keepdims=True)
        p = jnp.exp(s)
        p = p * pl.reciprocal(jnp.sum(p, axis=-1, keepdims=True), approx=True)
        outs.append(jax.lax.dot_general(p.astype(vh.dtype), vh,
                                        (((1,), (0,)), ((), ())),
                                        preferred_element_type=jnp.float32))
    o_ref[0] = jnp.concatenate(outs, axis=-1).astype(o_ref.dtype)


def multihead_attention(qkv, valid_lens, num_heads, head_dim):
    """qkv: (B, S, 3*num_heads*head_dim) fused projection; valid_lens: (B,)."""
    B, S, HD3 = qkv.shape
    HD = num_heads * head_dim
    assert HD3 == 3 * HD
    scale = 1.0 / math.sqrt(head_dim)
    itemsize = jnp.dtype(qkv.dtype).itemsize
    cost = pl.CostEstimate(
        flops=int(4 * B * num_heads * S * S * head_dim),
        transcendentals=int(B * num_heads * S * S),
        bytes_accessed=int(itemsize * B * S * (HD3 + HD) + 4 * B))
    # TODO(synk): for long sequences tile over q rows (flash-style) instead of
    # holding the full (S, S) score matrix per head in VMEM.
    return pl.pallas_call(
        functools.partial(_attn_kernel, num_heads=num_heads,
                          head_dim=head_dim, scale=scale),
        out_shape=jax.ShapeDtypeStruct((B, S, HD), qkv.dtype),
        grid_spec=pltpu.PrefetchScalarGridSpec(
            num_scalar_prefetch=1,
            grid=(B,),                     # even extent keeps both v7x TCs busy
            in_specs=[pl.BlockSpec((1, S, HD3), lambda b, vl: (b, 0, 0))],
            out_specs=pl.BlockSpec((1, S, HD), lambda b, vl: (b, 0, 0)),
        ),
        compiler_params=pltpu.CompilerParams(
            dimension_semantics=("parallel",),
            vmem_limit_bytes=VMEM_LIMIT_BYTES),
        cost_estimate=cost,
    )(valid_lens.astype(jnp.int32), qkv)


# ----------------------------------------------------------------------------
# Parameter init (deterministic, synthetic); padding/casting done ONCE here.
# ----------------------------------------------------------------------------
def init_params(key, vocab_size, num_hiddens, ffn_num_hiddens, num_heads,
                num_layers, max_len):
    keys = iter(jax.random.split(key, 16 + 8 * num_layers))

    def nrm(shape, scale=0.02):
        return (scale * jax.random.normal(next(keys), shape)).astype(jnp.float32)

    H = num_hiddens
    nhH = H * num_heads   # W_q/W_k/W_v output width per the d2l module variant
    zeros = lambda n: jnp.zeros((n,), jnp.float32)
    ones = lambda n: jnp.ones((n,), jnp.float32)

    params = {
        # Embedding tables in bf16 so encoder activations are bf16 end-to-end.
        "tok_emb": nrm((vocab_size, H), 1.0).astype(MATMUL_DTYPE),
        "seg_emb": nrm((2, H), 1.0).astype(MATMUL_DTYPE),
        "pos_emb": nrm((1, max_len, H), 1.0).astype(MATMUL_DTYPE),
        "blocks": [],
    }
    for _ in range(num_layers):
        params["blocks"].append({
            "qkv": pack_linear(nrm((H, 3 * nhH)), zeros(3 * nhH)),  # fused Q|K|V
            "out": pack_linear(nrm((nhH, H)), zeros(H)),
            "ffn1": pack_linear(nrm((H, ffn_num_hiddens)), zeros(ffn_num_hiddens)),
            "ffn2": pack_linear(nrm((ffn_num_hiddens, H)), zeros(H)),
            "ln1": pack_ln(ones(H), zeros(H)),
            "ln2": pack_ln(ones(H), zeros(H)),
        })

    # BERTModel.hidden (Linear + Tanh)
    params["hid"] = pack_linear(nrm((H, H)), zeros(H))
    # MaskLM mlp: Linear -> ReLU -> LayerNorm -> Linear
    params["mlm1"] = pack_linear(nrm((H, H)), zeros(H))
    params["mlm_ln"] = pack_ln(ones(H), zeros(H))
    # TODO(synk): the MLM vocab projection is the largest GEMM at BERT scale;
    # fp8 (v7x) / int8 (v5e/v6e) weight quantization would halve its DMA.
    params["mlm2"] = pack_linear(nrm((H, vocab_size)), zeros(vocab_size))
    # NextSentencePred
    params["nsp"] = pack_linear(nrm((H, 2)), zeros(2))
    return params


# ----------------------------------------------------------------------------
# BERT forward (glue in plain JAX, hot paths in the Pallas kernels above)
# ----------------------------------------------------------------------------
def bert_forward(params, tokens, segments, valid_lens, pred_positions, num_heads):
    # --- BERTEncoder ---
    # TODO(synk): embedding gathers stay plain JAX (no clean dense Pallas tile).
    X = params["tok_emb"][tokens] + params["seg_emb"][segments]
    B, S, H = X.shape
    X = X + params["pos_emb"][:, :S, :]
    head_dim = H                      # each head's width == num_hiddens (d2l variant)

    for p in params["blocks"]:
        qkv = linear(X, p["qkv"])                              # fused QKV GEMM
        att = multihead_attention(qkv, valid_lens, num_heads, head_dim)
        # W_o GEMM + residual add + LayerNorm fused in epilogue (AddNorm 1)
        Y = linear(att, p["out"], residual=X, ln=p["ln1"])
        h1 = linear(Y, p["ffn1"], activation="relu")           # FFN dense1 + ReLU
        # FFN dense2 GEMM + residual add + LayerNorm fused (AddNorm 2)
        X = linear(h1, p["ffn2"], residual=Y, ln=p["ln2"])
    encoded_X = X

    # --- MaskLM ---
    num_pred = pred_positions.shape[1]
    batch_idx = jnp.repeat(jnp.arange(B), num_pred)
    masked_X = encoded_X[batch_idx, pred_positions.reshape(-1)]   # gather (glue)
    masked_X = masked_X.reshape(B, num_pred, H)
    # Linear + ReLU + LayerNorm fused in one GEMM epilogue.
    h = linear(masked_X, params["mlm1"], activation="relu", ln=params["mlm_ln"])
    mlm_Y_hat = linear(h, params["mlm2"], out_dtype=jnp.float32)

    # --- NextSentencePred ---
    cls = encoded_X[:, 0, :]
    hid = linear(cls, params["hid"], activation="tanh")
    nsp_Y_hat = linear(hid, params["nsp"], out_dtype=jnp.float32)

    return encoded_X, mlm_Y_hat, nsp_Y_hat


# ----------------------------------------------------------------------------
# Main
# ----------------------------------------------------------------------------
if __name__ == "__main__":
    # Small, self-consistent config: key/query/value/hid/mlm/nsp in_features == num_hiddens.
    vocab_size = 100
    num_hiddens = 32
    ffn_num_hiddens = 64
    num_heads = 2
    num_layers = 2
    max_len = 64
    batch, seq = 2, 8

    root = jax.random.PRNGKey(0)
    k_par, k_tok = jax.random.split(root)

    params = init_params(k_par, vocab_size, num_hiddens, ffn_num_hiddens,
                         num_heads, num_layers, max_len)

    tokens = jax.random.randint(k_tok, (batch, seq), 0, vocab_size, dtype=jnp.int32)
    segments = jnp.array([[0, 0, 0, 0, 1, 1, 1, 1],
                          [0, 0, 0, 1, 1, 1, 1, 1]], dtype=jnp.int32)
    valid_lens = jnp.array([6, 7], dtype=jnp.int32)
    pred_positions = jnp.array([[1, 5, 2], [6, 1, 5]], dtype=jnp.int32)

    fwd = jax.jit(bert_forward, static_argnames=("num_heads",))
    encoded_X, mlm_Y_hat, nsp_Y_hat = fwd(
        params, tokens, segments, valid_lens, pred_positions, num_heads=num_heads)

    jax.block_until_ready((encoded_X, mlm_Y_hat, nsp_Y_hat))

    assert encoded_X.shape == (batch, seq, num_hiddens)
    assert mlm_Y_hat.shape == (batch, pred_positions.shape[1], vocab_size)
    assert nsp_Y_hat.shape == (batch, 2)
    assert bool(jnp.all(jnp.isfinite(encoded_X.astype(jnp.float32))))
    assert bool(jnp.all(jnp.isfinite(mlm_Y_hat)))
    assert bool(jnp.all(jnp.isfinite(nsp_Y_hat)))

    print("KERNEL_OK")
</pallas_src>

<mosaic_0001>
module attributes {stable_mosaic.version = 11 : i64} {
  func.func @_linear_kernel(%arg0: i32, %arg1: i32, %arg2: i32, %arg3: memref<16x128xbf16, #tpu.memory_space<vmem>>, %arg4: memref<128x256xbf16, #tpu.memory_space<vmem>>, %arg5: memref<1x256xf32, #tpu.memory_space<vmem>>, %arg6: memref<16x256xbf16, #tpu.memory_space<vmem>>, %arg7: memref<16x256xf32, #tpu.memory_space<vmem>>) attributes {dimension_semantics = [#tpu.dimension_semantics<parallel>, #tpu.dimension_semantics<parallel>, #tpu.dimension_semantics<arbitrary>], iteration_bounds = array<i64: 1, 1, 1>, scalar_prefetch = 0 : i64, scratch_operands = 1 : i64, tpu.core_type = #tpu.core_type<tc>, window_params = [{transform_indices = @transform_0, window_bounds = array<i64: 16, 128>}, {transform_indices = @transform_1, window_bounds = array<i64: 128, 256>}, {transform_indices = @transform_2, window_bounds = array<i64: 1, 256>}, {transform_indices = @transform_3, window_bounds = array<i64: 16, 256>}]} {
    %c0_i32 = arith.constant 0 : i32
    %0 = arith.cmpi eq, %arg2, %c0_i32 : i32
    %1 = arith.extui %0 : i1 to i32
    %c0_i32_0 = arith.constant 0 : i32
    %2 = arith.cmpi ne, %1, %c0_i32_0 : i32
    scf.if %2 {
      %cst_10 = arith.constant 0.000000e+00 : f32
      %12 = vector.broadcast %cst_10 : f32 to vector<16x256xf32>
      %c0_11 = arith.constant 0 : index
      %c0_12 = arith.constant 0 : index
      %13 = vector.load %arg7[%c0_11, %c0_12] : memref<16x256xf32, #tpu.memory_space<vmem>>, vector<16x256xf32>
      tpu.vector_store %arg7[%c0_11, %c0_12], %12 {strides = array<i32>} : memref<16x256xf32, #tpu.memory_space<vmem>>, vector<16x256xf32>,
    } else {
    }
    %c0 = arith.constant 0 : index
    %c0_1 = arith.constant 0 : index
    %3 = vector.load %arg7[%c0, %c0_1] : memref<16x256xf32, #tpu.memory_space<vmem>>, vector<16x256xf32>
    %c0_2 = arith.constant 0 : index
    %c0_3 = arith.constant 0 : index
    %4 = vector.load %arg3[%c0_2, %c0_3] : memref<16x128xbf16, #tpu.memory_space<vmem>>, vector<16x128xbf16>
    %c0_4 = arith.constant 0 : index
    %c0_5 = arith.constant 0 : index
    %5 = vector.load %arg4[%c0_4, %c0_5] : memref<128x256xbf16, #tpu.memory_space<vmem>>, vector<128x256xbf16>
    %cst = arith.constant dense<0.000000e+00> : vector<16x256xf32>
    %6 = tpu.matmul %4, %5, %cst {dimension_numbers = #tpu.dot_dimension_numbers<[1], [0], [0], [1], [0, 0, 1, 1], [], []>} : vector<16x128xbf16>, vector<128x256xbf16>, vector<16x256xf32> -> vector<16x256xf32>
    %7 = arith.addf %3, %6 : vector<16x256xf32>
    %c0_6 = arith.constant 0 : index
    %c0_7 = arith.constant 0 : index
    %8 = vector.load %arg7[%c0_6, %c0_7] : memref<16x256xf32, #tpu.memory_space<vmem>>, vector<16x256xf32>
    tpu.vector_store %arg7[%c0_6, %c0_7], %7 {strides = array<i32>} : memref<16x256xf32, #tpu.memory_space<vmem>>, vector<16x256xf32>,
    %c0_i32_8 = arith.constant 0 : i32
    %9 = arith.cmpi eq, %arg2, %c0_i32_8 : i32
    %10 = arith.extui %9 : i1 to i32
    %c0_i32_9 = arith.constant 0 : i32
    %11 = arith.cmpi ne, %10, %c0_i32_9 : i32
    scf.if %11 {
      %c0_10 = arith.constant 0 : index
      %c0_11 = arith.constant 0 : index
      %12 = vector.load %arg7[%c0_10, %c0_11] : memref<16x256xf32, #tpu.memory_space<vmem>>, vector<16x256xf32>
      %c0_12 = arith.constant 0 : index
      %c0_13 = arith.constant 0 : index
      %13 = vector.load %arg5[%c0_12, %c0_13] : memref<1x256xf32, #tpu.memory_space<vmem>>, vector<1x256xf32>
      %14 = vector.broadcast %13 : vector<1x256xf32> to vector<16x256xf32>
      %15 = arith.addf %12, %14 : vector<16x256xf32>
      %16 = arith.truncf %15 : vector<16x256xf32> to vector<16x256xbf16>
      %c0_14 = arith.constant 0 : index
      %c0_15 = arith.constant 0 : index
      %17 = vector.load %arg6[%c0_14, %c0_15] : memref<16x256xbf16, #tpu.memory_space<vmem>>, vector<16x256xbf16>
      tpu.vector_store %arg6[%c0_14, %c0_15], %16 {strides = array<i32>} : memref<16x256xbf16, #tpu.memory_space<vmem>>, vector<16x256xbf16>,
    } else {
    }
    return
  }
  func.func @transform_0(%arg0: i32, %arg1: i32, %arg2: i32) -> (i32, i32) {
    %c0_i32 = arith.constant 0 : i32
    return %arg0, %arg2 : i32, i32
  }
  func.func @transform_1(%arg0: i32, %arg1: i32, %arg2: i32) -> (i32, i32) {
    %c0_i32 = arith.constant 0 : i32
    return %arg2, %arg1 : i32, i32
  }
  func.func @transform_2(%arg0: i32, %arg1: i32, %arg2: i32) -> (i32, i32) {
    %c0_i32 = arith.constant 0 : i32
    %c0_i32_0 = arith.constant 0 : i32
    return %c0_i32, %arg1 : i32, i32
  }
  func.func @transform_3(%arg0: i32, %arg1: i32, %arg2: i32) -> (i32, i32) {
    %c0_i32 = arith.constant 0 : i32
    return %arg0, %arg1 : i32, i32
  }
}

module attributes {stable_mosaic.version = 11 : i64} {
  func.func @_attn_kernel(%arg0: i32, %arg1: memref<2xi32, #tpu.memory_space<smem>>, %arg2: memref<1x8x192xbf16, #tpu.memory_space<vmem>>, %arg3: memref<1x8x64xbf16, #tpu.memory_space<vmem>>) attributes {dimension_semantics = [#tpu.dimension_semantics<parallel>], iteration_bounds = array<i64: 2>, scalar_prefetch = 1 : i64, scratch_operands = 0 : i64, tpu.core_type = #tpu.core_type<tc>, window_params = [{transform_indices = @transform_0, window_bounds = array<i64: 1, 8, 192>}, {transform_indices = @transform_1, window_bounds = array<i64: 1, 8, 64>}]} {
    %0 = arith.index_cast %arg0 : i32 to index
    %1 = memref.load %arg1[%0] : memref<2xi32, #tpu.memory_space<smem>>
    %c0 = arith.constant 0 : index
    %c0_0 = arith.constant 0 : index
    %c0_1 = arith.constant 0 : index
    %2 = vector.load %arg2[%c0, %c0_0, %c0_1] : memref<1x8x192xbf16, #tpu.memory_space<vmem>>, vector<1x8x192xbf16>
    %3 = vector.shape_cast %2 : vector<1x8x192xbf16> to vector<8x192xbf16>
    %4 = vector.extract_strided_slice %3 {offsets = [0, 0], sizes = [8, 64], strides = [1, 1]} : vector<8x192xbf16> to vector<8x64xbf16>
    %cst = arith.constant 1.767580e-01 : bf16
    %5 = vector.broadcast %cst : bf16 to vector<8x64xbf16>
    %6 = arith.mulf %4, %5 : vector<8x64xbf16>
    %7 = vector.extract_strided_slice %3 {offsets = [0, 64], sizes = [8, 64], strides = [1, 1]} : vector<8x192xbf16> to vector<8x64xbf16>
    %8 = vector.extract_strided_slice %3 {offsets = [0, 128], sizes = [8, 64], strides = [1, 1]} : vector<8x192xbf16> to vector<8x64xbf16>
    %9 = tpu.iota {dimensions = array<i32: 1>} : vector<8x8xi32>
    %10 = vector.broadcast %1 : i32 to vector<8x8xi32>
    %11 = arith.cmpi slt, %9, %10 : vector<8x8xi32>
    %12 = vector.extract_strided_slice %6 {offsets = [0, 0], sizes = [8, 32], strides = [1, 1]} : vector<8x64xbf16> to vector<8x32xbf16>
    %13 = vector.extract_strided_slice %7 {offsets = [0, 0], sizes = [8, 32], strides = [1, 1]} : vector<8x64xbf16> to vector<8x32xbf16>
    %14 = vector.extract_strided_slice %8 {offsets = [0, 0], sizes = [8, 32], strides = [1, 1]} : vector<8x64xbf16> to vector<8x32xbf16>
    %cst_2 = arith.constant dense<0.000000e+00> : vector<8x8xf32>
    %15 = tpu.matmul %12, %13, %cst_2 {dimension_numbers = #tpu.dot_dimension_numbers<[1], [1], [0], [0], [0, 0, 1, 0], [], []>} : vector<8x32xbf16>, vector<8x32xbf16>, vector<8x8xf32> -> vector<8x8xf32>
    %cst_3 = arith.constant -1.000000e+06 : f32
    %16 = vector.broadcast %cst_3 : f32 to vector<8x8xf32>
    %17 = arith.select %11, %15, %16 : vector<8x8xi1>, vector<8x8xf32>
    %cst_4 = arith.constant dense<0xFF800000> : vector<8xf32>
    %18 = vector.multi_reduction <maximumf>, %17, %cst_4 [1] : vector<8x8xf32> to vector<8xf32>
    %19 = vector.shape_cast %18 : vector<8xf32> to vector<8x1xf32>
    %20 = vector.broadcast %19 : vector<8x1xf32> to vector<8x8xf32>
    %21 = arith.subf %17, %20 : vector<8x8xf32>
    %22 = math.exp %21 : vector<8x8xf32>
    %cst_5 = arith.constant dense<0.000000e+00> : vector<8xf32>
    %23 = vector.multi_reduction <add>, %22, %cst_5 [1] : vector<8x8xf32> to vector<8xf32>
    %24 = vector.shape_cast %23 : vector<8xf32> to vector<8x1xf32>
    %25 = tpu.reciprocal %24 {approx = true} : vector<8x1xf32> -> vector<8x1xf32>
    %26 = vector.broadcast %25 : vector<8x1xf32> to vector<8x8xf32>
    %27 = arith.mulf %22, %26 : vector<8x8xf32>
    %28 = arith.truncf %27 : vector<8x8xf32> to vector<8x8xbf16>
    %cst_6 = arith.constant dense<0.000000e+00> : vector<8x32xf32>
    %29 = tpu.matmul %28, %14, %cst_6 {dimension_numbers = #tpu.dot_dimension_numbers<[1], [0], [0], [1], [0, 0, 1, 1], [], []>} : vector<8x8xbf16>, vector<8x32xbf16>, vector<8x32xf32> -> vector<8x32xf32>
    %30 = vector.extract_strided_slice %6 {offsets = [0, 32], sizes = [8, 32], strides = [1, 1]} : vector<8x64xbf16> to vector<8x32xbf16>
    %31 = vector.extract_strided_slice %7 {offsets = [0, 32], sizes = [8, 32], strides = [1, 1]} : vector<8x64xbf16> to vector<8x32xbf16>
    %32 = vector.extract_strided_slice %8 {offsets = [0, 32], sizes = [8, 32], strides = [1, 1]} : vector<8x64xbf16> to vector<8x32xbf16>
    %cst_7 = arith.constant dense<0.000000e+00> : vector<8x8xf32>
    %33 = tpu.matmul %30, %31, %cst_7 {dimension_numbers = #tpu.dot_dimension_numbers<[1], [1], [0], [0], [0, 0, 1, 0], [], []>} : vector<8x32xbf16>, vector<8x32xbf16>, vector<8x8xf32> -> vector<8x8xf32>
    %cst_8 = arith.constant -1.000000e+06 : f32
    %34 = vector.broadcast %cst_8 : f32 to vector<8x8xf32>
    %35 = arith.select %11, %33, %34 : vector<8x8xi1>, vector<8x8xf32>
    %cst_9 = arith.constant dense<0xFF800000> : vector<8xf32>
    %36 = vector.multi_reduction <maximumf>, %35, %cst_9 [1] : vector<8x8xf32> to vector<8xf32>
    %37 = vector.shape_cast %36 : vector<8xf32> to vector<8x1xf32>
    %38 = vector.broadcast %37 : vector<8x1xf32> to vector<8x8xf32>
    %39 = arith.subf %35, %38 : vector<8x8xf32>
    %40 = math.exp %39 : vector<8x8xf32>
    %cst_10 = arith.constant dense<0.000000e+00> : vector<8xf32>
    %41 = vector.multi_reduction <add>, %40, %cst_10 [1] : vector<8x8xf32> to vector<8xf32>
    %42 = vector.shape_cast %41 : vector<8xf32> to vector<8x1xf32>
    %43 = tpu.reciprocal %42 {approx = true} : vector<8x1xf32> -> vector<8x1xf32>
    %44 = vector.broadcast %43 : vector<8x1xf32> to vector<8x8xf32>
    %45 = arith.mulf %40, %44 : vector<8x8xf32>
    %46 = arith.truncf %45 : vector<8x8xf32> to vector<8x8xbf16>
    %cst_11 = arith.constant dense<0.000000e+00> : vector<8x32xf32>
    %47 = tpu.matmul %46, %32, %cst_11 {dimension_numbers = #tpu.dot_dimension_numbers<[1], [0], [0], [1], [0, 0, 1, 1], [], []>} : vector<8x8xbf16>, vector<8x32xbf16>, vector<8x32xf32> -> vector<8x32xf32>
    %48 = tpu.concatenate %29, %47 in 1 : vector<8x32xf32>, vector<8x32xf32> -> vector<8x64xf32>
    %49 = arith.truncf %48 : vector<8x64xf32> to vector<8x64xbf16>
    %c0_12 = arith.constant 0 : index
    %c0_13 = arith.constant 0 : index
    %c0_14 = arith.constant 0 : index
    %50 = vector.load %arg3[%c0_12, %c0_13, %c0_14] : memref<1x8x64xbf16, #tpu.memory_space<vmem>>, vector<1x8x64xbf16>
    %51 = vector.shape_cast %50 : vector<1x8x64xbf16> to vector<8x64xbf16>
    %52 = vector.shape_cast %49 : vector<8x64xbf16> to vector<1x8x64xbf16>
    tpu.vector_store %arg3[%c0_12, %c0_13, %c0_14], %52 {strides = array<i32>} : memref<1x8x64xbf16, #tpu.memory_space<vmem>>, vector<1x8x64xbf16>,
    return
  }
  func.func @transform_0(%arg0: i32, %arg1: memref<2xi32, #tpu.memory_space<smem>>) -> (i32, i32, i32) {
    %c0_i32 = arith.constant 0 : i32
    %c0_i32_0 = arith.constant 0 : i32
    %c0_i32_1 = arith.constant 0 : i32
    return %arg0, %c0_i32, %c0_i32_0 : i32, i32, i32
  }
  func.func @transform_1(%arg0: i32, %arg1: memref<2xi32, #tpu.memory_space<smem>>) -> (i32, i32, i32) {
    %c0_i32 = arith.constant 0 : i32
    %c0_i32_0 = arith.constant 0 : i32
    %c0_i32_1 = arith.constant 0 : i32
    return %arg0, %c0_i32, %c0_i32_0 : i32, i32, i32
  }
}

module attributes {stable_mosaic.version = 11 : i64} {
  func.func @_linear_kernel(%arg0: i32, %arg1: i32, %arg2: i32, %arg3: memref<16x128xbf16, #tpu.memory_space<vmem>>, %arg4: memref<128x128xbf16, #tpu.memory_space<vmem>>, %arg5: memref<1x128xf32, #tpu.memory_space<vmem>>, %arg6: memref<16x128xbf16, #tpu.memory_space<vmem>>, %arg7: memref<16x128xf32, #tpu.memory_space<vmem>>) attributes {dimension_semantics = [#tpu.dimension_semantics<parallel>, #tpu.dimension_semantics<parallel>, #tpu.dimension_semantics<arbitrary>], iteration_bounds = array<i64: 1, 1, 1>, scalar_prefetch = 0 : i64, scratch_operands = 1 : i64, tpu.core_type = #tpu.core_type<tc>, window_params = [{transform_indices = @transform_0, window_bounds = array<i64: 16, 128>}, {transform_indices = @transform_1, window_bounds = array<i64: 128, 128>}, {transform_indices = @transform_2, window_bounds = array<i64: 1, 128>}, {transform_indices = @transform_3, window_bounds = array<i64: 16, 128>}]} {
    %c0_i32 = arith.constant 0 : i32
    %0 = arith.cmpi eq, %arg2, %c0_i32 : i32
    %1 = arith.extui %0 : i1 to i32
    %c0_i32_0 = arith.constant 0 : i32
    %2 = arith.cmpi ne, %1, %c0_i32_0 : i32
    scf.if %2 {
      %cst_10 = arith.constant 0.000000e+00 : f32
      %12 = vector.broadcast %cst_10 : f32 to vector<16x128xf32>
      %c0_11 = arith.constant 0 : index
      %c0_12 = arith.constant 0 : index
      %13 = vector.load %arg7[%c0_11, %c0_12] : memref<16x128xf32, #tpu.memory_space<vmem>>, vector<16x128xf32>
      tpu.vector_store %arg7[%c0_11, %c0_12], %12 {strides = array<i32>} : memref<16x128xf32, #tpu.memory_space<vmem>>, vector<16x128xf32>,
    } else {
    }
    %c0 = arith.constant 0 : index
    %c0_1 = arith.constant 0 : index
    %3 = vector.load %arg7[%c0, %c0_1] : memref<16x128xf32, #tpu.memory_space<vmem>>, vector<16x128xf32>
    %c0_2 = arith.constant 0 : index
    %c0_3 = arith.constant 0 : index
    %4 = vector.load %arg3[%c0_2, %c0_3] : memref<16x128xbf16, #tpu.memory_space<vmem>>, vector<16x128xbf16>
    %c0_4 = arith.constant 0 : index
    %c0_5 = arith.constant 0 : index
    %5 = vector.load %arg4[%c0_4, %c0_5] : memref<128x128xbf16, #tpu.memory_space<vmem>>, vector<128x128xbf16>
    %cst = arith.constant dense<0.000000e+00> : vector<16x128xf32>
    %6 = tpu.matmul %4, %5, %cst {dimension_numbers = #tpu.dot_dimension_numbers<[1], [0], [0], [1], [0, 0, 1, 1], [], []>} : vector<16x128xbf16>, vector<128x128xbf16>, vector<16x128xf32> -> vector<16x128xf32>
    %7 = arith.addf %3, %6 : vector<16x128xf32>
    %c0_6 = arith.constant 0 : index
    %c0_7 = arith.constant 0 : index
    %8 = vector.load %arg7[%c0_6, %c0_7] : memref<16x128xf32, #tpu.memory_space<vmem>>, vector<16x128xf32>
    tpu.vector_store %arg7[%c0_6, %c0_7], %7 {strides = array<i32>} : memref<16x128xf32, #tpu.memory_space<vmem>>, vector<16x128xf32>,
    %c0_i32_8 = arith.constant 0 : i32
    %9 = arith.cmpi eq, %arg2, %c0_i32_8 : i32
    %10 = arith.extui %9 : i1 to i32
    %c0_i32_9 = arith.constant 0 : i32
    %11 = arith.cmpi ne, %10, %c0_i32_9 : i32
    scf.if %11 {
      %c0_10 = arith.constant 0 : index
      %c0_11 = arith.constant 0 : index
      %12 = vector.load %arg7[%c0_10, %c0_11] : memref<16x128xf32, #tpu.memory_space<vmem>>, vector<16x128xf32>
      %c0_12 = arith.constant 0 : index
      %c0_13 = arith.constant 0 : index
      %13 = vector.load %arg5[%c0_12, %c0_13] : memref<1x128xf32, #tpu.memory_space<vmem>>, vector<1x128xf32>
      %14 = vector.broadcast %13 : vector<1x128xf32> to vector<16x128xf32>
      %15 = arith.addf %12, %14 : vector<16x128xf32>
      %cst_14 = arith.constant 0.000000e+00 : f32
      %16 = vector.broadcast %cst_14 : f32 to vector<16x128xf32>
      %17 = arith.maximumf %15, %16 : vector<16x128xf32>
      %18 = arith.truncf %17 : vector<16x128xf32> to vector<16x128xbf16>
      %c0_15 = arith.constant 0 : index
      %c0_16 = arith.constant 0 : index
      %19 = vector.load %arg6[%c0_15, %c0_16] : memref<16x128xbf16, #tpu.memory_space<vmem>>, vector<16x128xbf16>
      tpu.vector_store %arg6[%c0_15, %c0_16], %18 {strides = array<i32>} : memref<16x128xbf16, #tpu.memory_space<vmem>>, vector<16x128xbf16>,
    } else {
    }
    return
  }
  func.func @transform_0(%arg0: i32, %arg1: i32, %arg2: i32) -> (i32, i32) {
    %c0_i32 = arith.constant 0 : i32
    return %arg0, %arg2 : i32, i32
  }
  func.func @transform_1(%arg0: i32, %arg1: i32, %arg2: i32) -> (i32, i32) {
    %c0_i32 = arith.constant 0 : i32
    return %arg2, %arg1 : i32, i32
  }
  func.func @transform_2(%arg0: i32, %arg1: i32, %arg2: i32) -> (i32, i32) {
    %c0_i32 = arith.constant 0 : i32
    %c0_i32_0 = arith.constant 0 : i32
    return %c0_i32, %arg1 : i32, i32
  }
  func.func @transform_3(%arg0: i32, %arg1: i32, %arg2: i32) -> (i32, i32) {
    %c0_i32 = arith.constant 0 : i32
    return %arg0, %arg1 : i32, i32
  }
}

module attributes {stable_mosaic.version = 11 : i64} {
  func.func @_linear_kernel(%arg0: i32, %arg1: i32, %arg2: i32, %arg3: memref<16x128xbf16, #tpu.memory_space<vmem>>, %arg4: memref<128x128xbf16, #tpu.memory_space<vmem>>, %arg5: memref<1x128xf32, #tpu.memory_space<vmem>>, %arg6: memref<16x128xbf16, #tpu.memory_space<vmem>>, %arg7: memref<1x128xf32, #tpu.memory_space<vmem>>, %arg8: memref<1x128xf32, #tpu.memory_space<vmem>>, %arg9: memref<16x128xbf16, #tpu.memory_space<vmem>>, %arg10: memref<16x128xf32, #tpu.memory_space<vmem>>) attributes {dimension_semantics = [#tpu.dimension_semantics<parallel>, #tpu.dimension_semantics<parallel>, #tpu.dimension_semantics<arbitrary>], iteration_bounds = array<i64: 1, 1, 1>, scalar_prefetch = 0 : i64, scratch_operands = 1 : i64, tpu.core_type = #tpu.core_type<tc>, window_params = [{transform_indices = @transform_0, window_bounds = array<i64: 16, 128>}, {transform_indices = @transform_1, window_bounds = array<i64: 128, 128>}, {transform_indices = @transform_2, window_bounds = array<i64: 1, 128>}, {transform_indices = @transform_3, window_bounds = array<i64: 16, 128>}, {transform_indices = @transform_4, window_bounds = array<i64: 1, 128>}, {transform_indices = @transform_5, window_bounds = array<i64: 1, 128>}, {transform_indices = @transform_6, window_bounds = array<i64: 16, 128>}]} {
    %c0_i32 = arith.constant 0 : i32
    %0 = arith.cmpi eq, %arg2, %c0_i32 : i32
    %1 = arith.extui %0 : i1 to i32
    %c0_i32_0 = arith.constant 0 : i32
    %2 = arith.cmpi ne, %1, %c0_i32_0 : i32
    scf.if %2 {
      %cst_10 = arith.constant 0.000000e+00 : f32
      %12 = vector.broadcast %cst_10 : f32 to vector<16x128xf32>
      %c0_11 = arith.constant 0 : index
      %c0_12 = arith.constant 0 : index
      %13 = vector.load %arg10[%c0_11, %c0_12] : memref<16x128xf32, #tpu.memory_space<vmem>>, vector<16x128xf32>
      tpu.vector_store %arg10[%c0_11, %c0_12], %12 {strides = array<i32>} : memref<16x128xf32, #tpu.memory_space<vmem>>, vector<16x128xf32>,
    } else {
    }
    %c0 = arith.constant 0 : index
    %c0_1 = arith.constant 0 : index
    %3 = vector.load %arg10[%c0, %c0_1] : memref<16x128xf32, #tpu.memory_space<vmem>>, vector<16x128xf32>
    %c0_2 = arith.constant 0 : index
    %c0_3 = arith.constant 0 : index
    %4 = vector.load %arg3[%c0_2, %c0_3] : memref<16x128xbf16, #tpu.memory_space<vmem>>, vector<16x128xbf16>
    %c0_4 = arith.constant 0 : index
    %c0_5 = arith.constant 0 : index
    %5 = vector.load %arg4[%c0_4, %c0_5] : memref<128x128xbf16, #tpu.memory_space<vmem>>, vector<128x128xbf16>
    %cst = arith.constant dense<0.000000e+00> : vector<16x128xf32>
    %6 = tpu.matmul %4, %5, %cst {dimension_numbers = #tpu.dot_dimension_numbers<[1], [0], [0], [1], [0, 0, 1, 1], [], []>} : vector<16x128xbf16>, vector<128x128xbf16>, vector<16x128xf32> -> vector<16x128xf32>
    %7 = arith.addf %3, %6 : vector<16x128xf32>
    %c0_6 = arith.constant 0 : index
    %c0_7 = arith.constant 0 : index
    %8 = vector.load %arg10[%c0_6, %c0_7] : memref<16x128xf32, #tpu.memory_space<vmem>>, vector<16x128xf32>
    tpu.vector_store %arg10[%c0_6, %c0_7], %7 {strides = array<i32>} : memref<16x128xf32, #tpu.memory_space<vmem>>, vector<16x128xf32>,
    %c0_i32_8 = arith.constant 0 : i32
    %9 = arith.cmpi eq, %arg2, %c0_i32_8 : i32
    %10 = arith.extui %9 : i1 to i32
    %c0_i32_9 = arith.constant 0 : i32
    %11 = arith.cmpi ne, %10, %c0_i32_9 : i32
    scf.if %11 {
      %c0_10 = arith.constant 0 : index
      %c0_11 = arith.constant 0 : index
      %12 = vector.load %arg10[%c0_10, %c0_11] : memref<16x128xf32, #tpu.memory_space<vmem>>, vector<16x128xf32>
      %c0_12 = arith.constant 0 : index
      %c0_13 = arith.constant 0 : index
      %13 = vector.load %arg5[%c0_12, %c0_13] : memref<1x128xf32, #tpu.memory_space<vmem>>, vector<1x128xf32>
      %14 = vector.broadcast %13 : vector<1x128xf32> to vector<16x128xf32>
      %15 = arith.addf %12, %14 : vector<16x128xf32>
      %c0_14 = arith.constant 0 : index
      %c0_15 = arith.constant 0 : index
      %16 = vector.load %arg6[%c0_14, %c0_15] : memref<16x128xbf16, #tpu.memory_space<vmem>>, vector<16x128xbf16>
      %17 = arith.extf %16 : vector<16x128xbf16> to vector<16x128xf32>
      %18 = arith.addf %15, %17 : vector<16x128xf32>
      %cst_16 = arith.constant dense<0.000000e+00> : vector<16xf32>
      %19 = vector.multi_reduction <add>, %18, %cst_16 [1] : vector<16x128xf32> to vector<16xf32>
      %20 = vector.shape_cast %19 : vector<16xf32> to vector<16x1xf32>
      %cst_17 = arith.constant 3.125000e-02 : f32
      %21 = vector.broadcast %cst_17 : f32 to vector<16x1xf32>
      %22 = arith.mulf %20, %21 : vector<16x1xf32>
      %23 = arith.mulf %18, %18 : vector<16x128xf32>
      %cst_18 = arith.constant dense<0.000000e+00> : vector<16xf32>
      %24 = vector.multi_reduction <add>, %23, %cst_18 [1] : vector<16x128xf32> to vector<16xf32>
      %25 = vector.shape_cast %24 : vector<16xf32> to vector<16x1xf32>
      %cst_19 = arith.constant 3.125000e-02 : f32
      %26 = vector.broadcast %cst_19 : f32 to vector<16x1xf32>
      %27 = arith.mulf %25, %26 : vector<16x1xf32>
      %28 = arith.mulf %22, %22 : vector<16x1xf32>
      %29 = arith.subf %27, %28 : vector<16x1xf32>
      %30 = vector.broadcast %22 : vector<16x1xf32> to vector<16x128xf32>
      %31 = arith.subf %18, %30 : vector<16x128xf32>
      %cst_20 = arith.constant 9.99999974E-6 : f32
      %32 = vector.broadcast %cst_20 : f32 to vector<16x1xf32>
      %33 = arith.addf %29, %32 : vector<16x1xf32>
      %34 = math.rsqrt %33 : vector<16x1xf32>
      %35 = vector.broadcast %34 : vector<16x1xf32> to vector<16x128xf32>
      %36 = arith.mulf %31, %35 : vector<16x128xf32>
      %c0_21 = arith.constant 0 : index
      %c0_22 = arith.constant 0 : index
      %37 = vector.load %arg7[%c0_21, %c0_22] : memref<1x128xf32, #tpu.memory_space<vmem>>, vector<1x128xf32>
      %38 = vector.broadcast %37 : vector<1x128xf32> to vector<16x128xf32>
      %39 = arith.mulf %36, %38 : vector<16x128xf32>
      %c0_23 = arith.constant 0 : index
      %c0_24 = arith.constant 0 : index
      %40 = vector.load %arg8[%c0_23, %c0_24] : memref<1x128xf32, #tpu.memory_space<vmem>>, vector<1x128xf32>
      %41 = vector.broadcast %40 : vector<1x128xf32> to vector<16x128xf32>
      %42 = arith.addf %39, %41 : vector<16x128xf32>
      %43 = arith.truncf %42 : vector<16x128xf32> to vector<16x128xbf16>
      %c0_25 = arith.constant 0 : index
      %c0_26 = arith.constant 0 : index
      %44 = vector.load %arg9[%c0_25, %c0_26] : memref<16x128xbf16, #tpu.memory_space<vmem>>, vector<16x128xbf16>
      tpu.vector_store %arg9[%c0_25, %c0_26], %43 {strides = array<i32>} : memref<16x128xbf16, #tpu.memory_space<vmem>>, vector<16x128xbf16>,
    } else {
    }
    return
  }
  func.func @transform_0(%arg0: i32, %arg1: i32, %arg2: i32) -> (i32, i32) {
    %c0_i32 = arith.constant 0 : i32
    return %arg0, %arg2 : i32, i32
  }
  func.func @transform_1(%arg0: i32, %arg1: i32, %arg2: i32) -> (i32, i32) {
    %c0_i32 = arith.constant 0 : i32
    return %arg2, %arg1 : i32, i32
  }
  func.func @transform_2(%arg0: i32, %arg1: i32, %arg2: i32) -> (i32, i32) {
    %c0_i32 = arith.constant 0 : i32
    %c0_i32_0 = arith.constant 0 : i32
    return %c0_i32, %arg1 : i32, i32
  }
  func.func @transform_3(%arg0: i32, %arg1: i32, %arg2: i32) -> (i32, i32) {
    %c0_i32 = arith.constant 0 : i32
    return %arg0, %arg1 : i32, i32
  }
  func.func @transform_4(%arg0: i32, %arg1: i32, %arg2: i32) -> (i32, i32) {
    %c0_i32 = arith.constant 0 : i32
    %c0_i32_0 = arith.constant 0 : i32
    return %c0_i32, %arg1 : i32, i32
  }
  func.func @transform_5(%arg0: i32, %arg1: i32, %arg2: i32) -> (i32, i32) {
    %c0_i32 = arith.constant 0 : i32
    %c0_i32_0 = arith.constant 0 : i32
    return %c0_i32, %arg1 : i32, i32
  }
  func.func @transform_6(%arg0: i32, %arg1: i32, %arg2: i32) -> (i32, i32) {
    %c0_i32 = arith.constant 0 : i32
    return %arg0, %arg1 : i32, i32
  }
}

module attributes {stable_mosaic.version = 11 : i64} {
  func.func @_linear_kernel(%arg0: i32, %arg1: i32, %arg2: i32, %arg3: memref<8x128xbf16, #tpu.memory_space<vmem>>, %arg4: memref<128x128xbf16, #tpu.memory_space<vmem>>, %arg5: memref<1x128xf32, #tpu.memory_space<vmem>>, %arg6: memref<1x128xf32, #tpu.memory_space<vmem>>, %arg7: memref<1x128xf32, #tpu.memory_space<vmem>>, %arg8: memref<8x128xbf16, #tpu.memory_space<vmem>>, %arg9: memref<8x128xf32, #tpu.memory_space<vmem>>) attributes {dimension_semantics = [#tpu.dimension_semantics<parallel>, #tpu.dimension_semantics<parallel>, #tpu.dimension_semantics<arbitrary>], iteration_bounds = array<i64: 1, 1, 1>, scalar_prefetch = 0 : i64, scratch_operands = 1 : i64, tpu.core_type = #tpu.core_type<tc>, window_params = [{transform_indices = @transform_0, window_bounds = array<i64: 8, 128>}, {transform_indices = @transform_1, window_bounds = array<i64: 128, 128>}, {transform_indices = @transform_2, window_bounds = array<i64: 1, 128>}, {transform_indices = @transform_3, window_bounds = array<i64: 1, 128>}, {transform_indices = @transform_4, window_bounds = array<i64: 1, 128>}, {transform_indices = @transform_5, window_bounds = array<i64: 8, 128>}]} {
    %c0_i32 = arith.constant 0 : i32
    %0 = arith.cmpi eq, %arg2, %c0_i32 : i32
    %1 = arith.extui %0 : i1 to i32
    %c0_i32_0 = arith.constant 0 : i32
    %2 = arith.cmpi ne, %1, %c0_i32_0 : i32
    scf.if %2 {
      %cst_10 = arith.constant 0.000000e+00 : f32
      %12 = vector.broadcast %cst_10 : f32 to vector<8x128xf32>
      %c0_11 = arith.constant 0 : index
      %c0_12 = arith.constant 0 : index
      %13 = vector.load %arg9[%c0_11, %c0_12] : memref<8x128xf32, #tpu.memory_space<vmem>>, vector<8x128xf32>
      tpu.vector_store %arg9[%c0_11, %c0_12], %12 {strides = array<i32>} : memref<8x128xf32, #tpu.memory_space<vmem>>, vector<8x128xf32>,
    } else {
    }
    %c0 = arith.constant 0 : index
    %c0_1 = arith.constant 0 : index
    %3 = vector.load %arg9[%c0, %c0_1] : memref<8x128xf32, #tpu.memory_space<vmem>>, vector<8x128xf32>
    %c0_2 = arith.constant 0 : index
    %c0_3 = arith.constant 0 : index
    %4 = vector.load %arg3[%c0_2, %c0_3] : memref<8x128xbf16, #tpu.memory_space<vmem>>, vector<8x128xbf16>
    %c0_4 = arith.constant 0 : index
    %c0_5 = arith.constant 0 : index
    %5 = vector.load %arg4[%c0_4, %c0_5] : memref<128x128xbf16, #tpu.memory_space<vmem>>, vector<128x128xbf16>
    %cst = arith.constant dense<0.000000e+00> : vector<8x128xf32>
    %6 = tpu.matmul %4, %5, %cst {dimension_numbers = #tpu.dot_dimension_numbers<[1], [0], [0], [1], [0, 0, 1, 1], [], []>} : vector<8x128xbf16>, vector<128x128xbf16>, vector<8x128xf32> -> vector<8x128xf32>
    %7 = arith.addf %3, %6 : vector<8x128xf32>
    %c0_6 = arith.constant 0 : index
    %c0_7 = arith.constant 0 : index
    %8 = vector.load %arg9[%c0_6, %c0_7] : memref<8x128xf32, #tpu.memory_space<vmem>>, vector<8x128xf32>
    tpu.vector_store %arg9[%c0_6, %c0_7], %7 {strides = array<i32>} : memref<8x128xf32, #tpu.memory_space<vmem>>, vector<8x128xf32>,
    %c0_i32_8 = arith.constant 0 : i32
    %9 = arith.cmpi eq, %arg2, %c0_i32_8 : i32
    %10 = arith.extui %9 : i1 to i32
    %c0_i32_9 = arith.constant 0 : i32
    %11 = arith.cmpi ne, %10, %c0_i32_9 : i32
    scf.if %11 {
      %c0_10 = arith.constant 0 : index
      %c0_11 = arith.constant 0 : index
      %12 = vector.load %arg9[%c0_10, %c0_11] : memref<8x128xf32, #tpu.memory_space<vmem>>, vector<8x128xf32>
      %c0_12 = arith.constant 0 : index
      %c0_13 = arith.constant 0 : index
      %13 = vector.load %arg5[%c0_12, %c0_13] : memref<1x128xf32, #tpu.memory_space<vmem>>, vector<1x128xf32>
      %14 = vector.broadcast %13 : vector<1x128xf32> to vector<8x128xf32>
      %15 = arith.addf %12, %14 : vector<8x128xf32>
      %cst_14 = arith.constant 0.000000e+00 : f32
      %16 = vector.broadcast %cst_14 : f32 to vector<8x128xf32>
      %17 = arith.maximumf %15, %16 : vector<8x128xf32>
      %cst_15 = arith.constant dense<0.000000e+00> : vector<8xf32>
      %18 = vector.multi_reduction <add>, %17, %cst_15 [1] : vector<8x128xf32> to vector<8xf32>
      %19 = vector.shape_cast %18 : vector<8xf32> to vector<8x1xf32>
      %cst_16 = arith.constant 3.125000e-02 : f32
      %20 = vector.broadcast %cst_16 : f32 to vector<8x1xf32>
      %21 = arith.mulf %19, %20 : vector<8x1xf32>
      %22 = arith.mulf %17, %17 : vector<8x128xf32>
      %cst_17 = arith.constant dense<0.000000e+00> : vector<8xf32>
      %23 = vector.multi_reduction <add>, %22, %cst_17 [1] : vector<8x128xf32> to vector<8xf32>
      %24 = vector.shape_cast %23 : vector<8xf32> to vector<8x1xf32>
      %cst_18 = arith.constant 3.125000e-02 : f32
      %25 = vector.broadcast %cst_18 : f32 to vector<8x1xf32>
      %26 = arith.mulf %24, %25 : vector<8x1xf32>
      %27 = arith.mulf %21, %21 : vector<8x1xf32>
      %28 = arith.subf %26, %27 : vector<8x1xf32>
      %29 = vector.broadcast %21 : vector<8x1xf32> to vector<8x128xf32>
      %30 = arith.subf %17, %29 : vector<8x128xf32>
      %cst_19 = arith.constant 9.99999974E-6 : f32
      %31 = vector.broadcast %cst_19 : f32 to vector<8x1xf32>
      %32 = arith.addf %28, %31 : vector<8x1xf32>
      %33 = math.rsqrt %32 : vector<8x1xf32>
      %34 = vector.broadcast %33 : vector<8x1xf32> to vector<8x128xf32>
      %35 = arith.mulf %30, %34 : vector<8x128xf32>
      %c0_20 = arith.constant 0 : index
      %c0_21 = arith.constant 0 : index
      %36 = vector.load %arg6[%c0_20, %c0_21] : memref<1x128xf32, #tpu.memory_space<vmem>>, vector<1x128xf32>
      %37 = vector.broadcast %36 : vector<1x128xf32> to vector<8x128xf32>
      %38 = arith.mulf %35, %37 : vector<8x128xf32>
      %c0_22 = arith.constant 0 : index
      %c0_23 = arith.constant 0 : index
      %39 = vector.load %arg7[%c0_22, %c0_23] : memref<1x128xf32, #tpu.memory_space<vmem>>, vector<1x128xf32>
      %40 = vector.broadcast %39 : vector<1x128xf32> to vector<8x128xf32>
      %41 = arith.addf %38, %40 : vector<8x128xf32>
      %42 = arith.truncf %41 : vector<8x128xf32> to vector<8x128xbf16>
      %c0_24 = arith.constant 0 : index
      %c0_25 = arith.constant 0 : index
      %43 = vector.load %arg8[%c0_24, %c0_25] : memref<8x128xbf16, #tpu.memory_space<vmem>>, vector<8x128xbf16>
      tpu.vector_store %arg8[%c0_24, %c0_25], %42 {strides = array<i32>} : memref<8x128xbf16, #tpu.memory_space<vmem>>, vector<8x128xbf16>,
    } else {
    }
    return
  }
  func.func @transform_0(%arg0: i32, %arg1: i32, %arg2: i32) -> (i32, i32) {
    %c0_i32 = arith.constant 0 : i32
    return %arg0, %arg2 : i32, i32
  }
  func.func @transform_1(%arg0: i32, %arg1: i32, %arg2: i32) -> (i32, i32) {
    %c0_i32 = arith.constant 0 : i32
    return %arg2, %arg1 : i32, i32
  }
  func.func @transform_2(%arg0: i32, %arg1: i32, %arg2: i32) -> (i32, i32) {
    %c0_i32 = arith.constant 0 : i32
    %c0_i32_0 = arith.constant 0 : i32
    return %c0_i32, %arg1 : i32, i32
  }
  func.func @transform_3(%arg0: i32, %arg1: i32, %arg2: i32) -> (i32, i32) {
    %c0_i32 = arith.constant 0 : i32
    %c0_i32_0 = arith.constant 0 : i32
    return %c0_i32, %arg1 : i32, i32
  }
  func.func @transform_4(%arg0: i32, %arg1: i32, %arg2: i32) -> (i32, i32) {
    %c0_i32 = arith.constant 0 : i32
    %c0_i32_0 = arith.constant 0 : i32
    return %c0_i32, %arg1 : i32, i32
  }
  func.func @transform_5(%arg0: i32, %arg1: i32, %arg2: i32) -> (i32, i32) {
    %c0_i32 = arith.constant 0 : i32
    return %arg0, %arg1 : i32, i32
  }
}

module attributes {stable_mosaic.version = 11 : i64} {
  func.func @_linear_kernel(%arg0: i32, %arg1: i32, %arg2: i32, %arg3: memref<8x128xbf16, #tpu.memory_space<vmem>>, %arg4: memref<128x128xbf16, #tpu.memory_space<vmem>>, %arg5: memref<1x128xf32, #tpu.memory_space<vmem>>, %arg6: memref<8x128xf32, #tpu.memory_space<vmem>>, %arg7: memref<8x128xf32, #tpu.memory_space<vmem>>) attributes {dimension_semantics = [#tpu.dimension_semantics<parallel>, #tpu.dimension_semantics<parallel>, #tpu.dimension_semantics<arbitrary>], iteration_bounds = array<i64: 1, 1, 1>, scalar_prefetch = 0 : i64, scratch_operands = 1 : i64, tpu.core_type = #tpu.core_type<tc>, window_params = [{transform_indices = @transform_0, window_bounds = array<i64: 8, 128>}, {transform_indices = @transform_1, window_bounds = array<i64: 128, 128>}, {transform_indices = @transform_2, window_bounds = array<i64: 1, 128>}, {transform_indices = @transform_3, window_bounds = array<i64: 8, 128>}]} {
    %c0_i32 = arith.constant 0 : i32
    %0 = arith.cmpi eq, %arg2, %c0_i32 : i32
    %1 = arith.extui %0 : i1 to i32
    %c0_i32_0 = arith.constant 0 : i32
    %2 = arith.cmpi ne, %1, %c0_i32_0 : i32
    scf.if %2 {
      %cst_10 = arith.constant 0.000000e+00 : f32
      %12 = vector.broadcast %cst_10 : f32 to vector<8x128xf32>
      %c0_11 = arith.constant 0 : index
      %c0_12 = arith.constant 0 : index
      %13 = vector.load %arg7[%c0_11, %c0_12] : memref<8x128xf32, #tpu.memory_space<vmem>>, vector<8x128xf32>
      tpu.vector_store %arg7[%c0_11, %c0_12], %12 {strides = array<i32>} : memref<8x128xf32, #tpu.memory_space<vmem>>, vector<8x128xf32>,
    } else {
    }
    %c0 = arith.constant 0 : index
    %c0_1 = arith.constant 0 : index
    %3 = vector.load %arg7[%c0, %c0_1] : memref<8x128xf32, #tpu.memory_space<vmem>>, vector<8x128xf32>
    %c0_2 = arith.constant 0 : index
    %c0_3 = arith.constant 0 : index
    %4 = vector.load %arg3[%c0_2, %c0_3] : memref<8x128xbf16, #tpu.memory_space<vmem>>, vector<8x128xbf16>
    %c0_4 = arith.constant 0 : index
    %c0_5 = arith.constant 0 : index
    %5 = vector.load %arg4[%c0_4, %c0_5] : memref<128x128xbf16, #tpu.memory_space<vmem>>, vector<128x128xbf16>
    %cst = arith.constant dense<0.000000e+00> : vector<8x128xf32>
    %6 = tpu.matmul %4, %5, %cst {dimension_numbers = #tpu.dot_dimension_numbers<[1], [0], [0], [1], [0, 0, 1, 1], [], []>} : vector<8x128xbf16>, vector<128x128xbf16>, vector<8x128xf32> -> vector<8x128xf32>
    %7 = arith.addf %3, %6 : vector<8x128xf32>
    %c0_6 = arith.constant 0 : index
    %c0_7 = arith.constant 0 : index
    %8 = vector.load %arg7[%c0_6, %c0_7] : memref<8x128xf32, #tpu.memory_space<vmem>>, vector<8x128xf32>
    tpu.vector_store %arg7[%c0_6, %c0_7], %7 {strides = array<i32>} : memref<8x128xf32, #tpu.memory_space<vmem>>, vector<8x128xf32>,
    %c0_i32_8 = arith.constant 0 : i32
    %9 = arith.cmpi eq, %arg2, %c0_i32_8 : i32
    %10 = arith.extui %9 : i1 to i32
    %c0_i32_9 = arith.constant 0 : i32
    %11 = arith.cmpi ne, %10, %c0_i32_9 : i32
    scf.if %11 {
      %c0_10 = arith.constant 0 : index
      %c0_11 = arith.constant 0 : index
      %12 = vector.load %arg7[%c0_10, %c0_11] : memref<8x128xf32, #tpu.memory_space<vmem>>, vector<8x128xf32>
      %c0_12 = arith.constant 0 : index
      %c0_13 = arith.constant 0 : index
      %13 = vector.load %arg5[%c0_12, %c0_13] : memref<1x128xf32, #tpu.memory_space<vmem>>, vector<1x128xf32>
      %14 = vector.broadcast %13 : vector<1x128xf32> to vector<8x128xf32>
      %15 = arith.addf %12, %14 : vector<8x128xf32>
      %c0_14 = arith.constant 0 : index
      %c0_15 = arith.constant 0 : index
      %16 = vector.load %arg6[%c0_14, %c0_15] : memref<8x128xf32, #tpu.memory_space<vmem>>, vector<8x128xf32>
      tpu.vector_store %arg6[%c0_14, %c0_15], %15 {strides = array<i32>} : memref<8x128xf32, #tpu.memory_space<vmem>>, vector<8x128xf32>,
    } else {
    }
    return
  }
  func.func @transform_0(%arg0: i32, %arg1: i32, %arg2: i32) -> (i32, i32) {
    %c0_i32 = arith.constant 0 : i32
    return %arg0, %arg2 : i32, i32
  }
  func.func @transform_1(%arg0: i32, %arg1: i32, %arg2: i32) -> (i32, i32) {
    %c0_i32 = arith.constant 0 : i32
    return %arg2, %arg1 : i32, i32
  }
  func.func @transform_2(%arg0: i32, %arg1: i32, %arg2: i32) -> (i32, i32) {
    %c0_i32 = arith.constant 0 : i32
    %c0_i32_0 = arith.constant 0 : i32
    return %c0_i32, %arg1 : i32, i32
  }
  func.func @transform_3(%arg0: i32, %arg1: i32, %arg2: i32) -> (i32, i32) {
    %c0_i32 = arith.constant 0 : i32
    return %arg0, %arg1 : i32, i32
  }
}

module attributes {stable_mosaic.version = 11 : i64} {
  func.func @_linear_kernel(%arg0: i32, %arg1: i32, %arg2: i32, %arg3: memref<8x128xbf16, #tpu.memory_space<vmem>>, %arg4: memref<128x128xbf16, #tpu.memory_space<vmem>>, %arg5: memref<1x128xf32, #tpu.memory_space<vmem>>, %arg6: memref<8x128xf32, #tpu.memory_space<vmem>>, %arg7: memref<8x128xf32, #tpu.memory_space<vmem>>) attributes {dimension_semantics = [#tpu.dimension_semantics<parallel>, #tpu.dimension_semantics<parallel>, #tpu.dimension_semantics<arbitrary>], iteration_bounds = array<i64: 1, 1, 1>, scalar_prefetch = 0 : i64, scratch_operands = 1 : i64, tpu.core_type = #tpu.core_type<tc>, window_params = [{transform_indices = @transform_0, window_bounds = array<i64: 8, 128>}, {transform_indices = @transform_1, window_bounds = array<i64: 128, 128>}, {transform_indices = @transform_2, window_bounds = array<i64: 1, 128>}, {transform_indices = @transform_3, window_bounds = array<i64: 8, 128>}]} {
    %c0_i32 = arith.constant 0 : i32
    %0 = arith.cmpi eq, %arg2, %c0_i32 : i32
    %1 = arith.extui %0 : i1 to i32
    %c0_i32_0 = arith.constant 0 : i32
    %2 = arith.cmpi ne, %1, %c0_i32_0 : i32
    scf.if %2 {
      %cst_10 = arith.constant 0.000000e+00 : f32
      %12 = vector.broadcast %cst_10 : f32 to vector<8x128xf32>
      %c0_11 = arith.constant 0 : index
      %c0_12 = arith.constant 0 : index
      %13 = vector.load %arg7[%c0_11, %c0_12] : memref<8x128xf32, #tpu.memory_space<vmem>>, vector<8x128xf32>
      tpu.vector_store %arg7[%c0_11, %c0_12], %12 {strides = array<i32>} : memref<8x128xf32, #tpu.memory_space<vmem>>, vector<8x128xf32>,
    } else {
    }
    %c0 = arith.constant 0 : index
    %c0_1 = arith.constant 0 : index
    %3 = vector.load %arg7[%c0, %c0_1] : memref<8x128xf32, #tpu.memory_space<vmem>>, vector<8x128xf32>
    %c0_2 = arith.constant 0 : index
    %c0_3 = arith.constant 0 : index
    %4 = vector.load %arg3[%c0_2, %c0_3] : memref<8x128xbf16, #tpu.memory_space<vmem>>, vector<8x128xbf16>
    %c0_4 = arith.constant 0 : index
    %c0_5 = arith.constant 0 : index
    %5 = vector.load %arg4[%c0_4, %c0_5] : memref<128x128xbf16, #tpu.memory_space<vmem>>, vector<128x128xbf16>
    %cst = arith.constant dense<0.000000e+00> : vector<8x128xf32>
    %6 = tpu.matmul %4, %5, %cst {dimension_numbers = #tpu.dot_dimension_numbers<[1], [0], [0], [1], [0, 0, 1, 1], [], []>} : vector<8x128xbf16>, vector<128x128xbf16>, vector<8x128xf32> -> vector<8x128xf32>
    %7 = arith.addf %3, %6 : vector<8x128xf32>
    %c0_6 = arith.constant 0 : index
    %c0_7 = arith.constant 0 : index
    %8 = vector.load %arg7[%c0_6, %c0_7] : memref<8x128xf32, #tpu.memory_space<vmem>>, vector<8x128xf32>
    tpu.vector_store %arg7[%c0_6, %c0_7], %7 {strides = array<i32>} : memref<8x128xf32, #tpu.memory_space<vmem>>, vector<8x128xf32>,
    %c0_i32_8 = arith.constant 0 : i32
    %9 = arith.cmpi eq, %arg2, %c0_i32_8 : i32
    %10 = arith.extui %9 : i1 to i32
    %c0_i32_9 = arith.constant 0 : i32
    %11 = arith.cmpi ne, %10, %c0_i32_9 : i32
    scf.if %11 {
      %c0_10 = arith.constant 0 : index
      %c0_11 = arith.constant 0 : index
      %12 = vector.load %arg7[%c0_10, %c0_11] : memref<8x128xf32, #tpu.memory_space<vmem>>, vector<8x128xf32>
      %c0_12 = arith.constant 0 : index
      %c0_13 = arith.constant 0 : index
      %13 = vector.load %arg5[%c0_12, %c0_13] : memref<1x128xf32, #tpu.memory_space<vmem>>, vector<1x128xf32>
      %14 = vector.broadcast %13 : vector<1x128xf32> to vector<8x128xf32>
      %15 = arith.addf %12, %14 : vector<8x128xf32>
      %c0_14 = arith.constant 0 : index
      %c0_15 = arith.constant 0 : index
      %16 = vector.load %arg6[%c0_14, %c0_15] : memref<8x128xf32, #tpu.memory_space<vmem>>, vector<8x128xf32>
      tpu.vector_store %arg6[%c0_14, %c0_15], %15 {strides = array<i32>} : memref<8x128xf32, #tpu.memory_space<vmem>>, vector<8x128xf32>,
    } else {
    }
    return
  }
  func.func @transform_0(%arg0: i32, %arg1: i32, %arg2: i32) -> (i32, i32) {
    %c0_i32 = arith.constant 0 : i32
    return %arg0, %arg2 : i32, i32
  }
  func.func @transform_1(%arg0: i32, %arg1: i32, %arg2: i32) -> (i32, i32) {
    %c0_i32 = arith.constant 0 : i32
    return %arg2, %arg1 : i32, i32
  }
  func.func @transform_2(%arg0: i32, %arg1: i32, %arg2: i32) -> (i32, i32) {
    %c0_i32 = arith.constant 0 : i32
    %c0_i32_0 = arith.constant 0 : i32
    return %c0_i32, %arg1 : i32, i32
  }
  func.func @transform_3(%arg0: i32, %arg1: i32, %arg2: i32) -> (i32, i32) {
    %c0_i32 = arith.constant 0 : i32
    return %arg0, %arg1 : i32, i32
  }
}

module attributes {stable_mosaic.version = 11 : i64} {
  func.func @_linear_kernel(%arg0: i32, %arg1: i32, %arg2: i32, %arg3: memref<8x128xbf16, #tpu.memory_space<vmem>>, %arg4: memref<128x128xbf16, #tpu.memory_space<vmem>>, %arg5: memref<1x128xf32, #tpu.memory_space<vmem>>, %arg6: memref<8x128xbf16, #tpu.memory_space<vmem>>, %arg7: memref<8x128xf32, #tpu.memory_space<vmem>>) attributes {dimension_semantics = [#tpu.dimension_semantics<parallel>, #tpu.dimension_semantics<parallel>, #tpu.dimension_semantics<arbitrary>], iteration_bounds = array<i64: 1, 1, 1>, scalar_prefetch = 0 : i64, scratch_operands = 1 : i64, tpu.core_type = #tpu.core_type<tc>, window_params = [{transform_indices = @transform_0, window_bounds = array<i64: 8, 128>}, {transform_indices = @transform_1, window_bounds = array<i64: 128, 128>}, {transform_indices = @transform_2, window_bounds = array<i64: 1, 128>}, {transform_indices = @transform_3, window_bounds = array<i64: 8, 128>}]} {
    %c0_i32 = arith.constant 0 : i32
    %0 = arith.cmpi eq, %arg2, %c0_i32 : i32
    %1 = arith.extui %0 : i1 to i32
    %c0_i32_0 = arith.constant 0 : i32
    %2 = arith.cmpi ne, %1, %c0_i32_0 : i32
    scf.if %2 {
      %cst_10 = arith.constant 0.000000e+00 : f32
      %12 = vector.broadcast %cst_10 : f32 to vector<8x128xf32>
      %c0_11 = arith.constant 0 : index
      %c0_12 = arith.constant 0 : index
      %13 = vector.load %arg7[%c0_11, %c0_12] : memref<8x128xf32, #tpu.memory_space<vmem>>, vector<8x128xf32>
      tpu.vector_store %arg7[%c0_11, %c0_12], %12 {strides = array<i32>} : memref<8x128xf32, #tpu.memory_space<vmem>>, vector<8x128xf32>,
    } else {
    }
    %c0 = arith.constant 0 : index
    %c0_1 = arith.constant 0 : index
    %3 = vector.load %arg7[%c0, %c0_1] : memref<8x128xf32, #tpu.memory_space<vmem>>, vector<8x128xf32>
    %c0_2 = arith.constant 0 : index
    %c0_3 = arith.constant 0 : index
    %4 = vector.load %arg3[%c0_2, %c0_3] : memref<8x128xbf16, #tpu.memory_space<vmem>>, vector<8x128xbf16>
    %c0_4 = arith.constant 0 : index
    %c0_5 = arith.constant 0 : index
    %5 = vector.load %arg4[%c0_4, %c0_5] : memref<128x128xbf16, #tpu.memory_space<vmem>>, vector<128x128xbf16>
    %cst = arith.constant dense<0.000000e+00> : vector<8x128xf32>
    %6 = tpu.matmul %4, %5, %cst {dimension_numbers = #tpu.dot_dimension_numbers<[1], [0], [0], [1], [0, 0, 1, 1], [], []>} : vector<8x128xbf16>, vector<128x128xbf16>, vector<8x128xf32> -> vector<8x128xf32>
    %7 = arith.addf %3, %6 : vector<8x128xf32>
    %c0_6 = arith.constant 0 : index
    %c0_7 = arith.constant 0 : index
    %8 = vector.load %arg7[%c0_6, %c0_7] : memref<8x128xf32, #tpu.memory_space<vmem>>, vector<8x128xf32>
    tpu.vector_store %arg7[%c0_6, %c0_7], %7 {strides = array<i32>} : memref<8x128xf32, #tpu.memory_space<vmem>>, vector<8x128xf32>,
    %c0_i32_8 = arith.constant 0 : i32
    %9 = arith.cmpi eq, %arg2, %c0_i32_8 : i32
    %10 = arith.extui %9 : i1 to i32
    %c0_i32_9 = arith.constant 0 : i32
    %11 = arith.cmpi ne, %10, %c0_i32_9 : i32
    scf.if %11 {
      %c0_10 = arith.constant 0 : index
      %c0_11 = arith.constant 0 : index
      %12 = vector.load %arg7[%c0_10, %c0_11] : memref<8x128xf32, #tpu.memory_space<vmem>>, vector<8x128xf32>
      %c0_12 = arith.constant 0 : index
      %c0_13 = arith.constant 0 : index
      %13 = vector.load %arg5[%c0_12, %c0_13] : memref<1x128xf32, #tpu.memory_space<vmem>>, vector<1x128xf32>
      %14 = vector.broadcast %13 : vector<1x128xf32> to vector<8x128xf32>
      %15 = arith.addf %12, %14 : vector<8x128xf32>
      %16 = math.tanh %15 : vector<8x128xf32>
      %17 = arith.truncf %16 : vector<8x128xf32> to vector<8x128xbf16>
      %c0_14 = arith.constant 0 : index
      %c0_15 = arith.constant 0 : index
      %18 = vector.load %arg6[%c0_14, %c0_15] : memref<8x128xbf16, #tpu.memory_space<vmem>>, vector<8x128xbf16>
      tpu.vector_store %arg6[%c0_14, %c0_15], %17 {strides = array<i32>} : memref<8x128xbf16, #tpu.memory_space<vmem>>, vector<8x128xbf16>,
    } else {
    }
    return
  }
  func.func @transform_0(%arg0: i32, %arg1: i32, %arg2: i32) -> (i32, i32) {
    %c0_i32 = arith.constant 0 : i32
    return %arg0, %arg2 : i32, i32
  }
  func.func @transform_1(%arg0: i32, %arg1: i32, %arg2: i32) -> (i32, i32) {
    %c0_i32 = arith.constant 0 : i32
    return %arg2, %arg1 : i32, i32
  }
  func.func @transform_2(%arg0: i32, %arg1: i32, %arg2: i32) -> (i32, i32) {
    %c0_i32 = arith.constant 0 : i32
    %c0_i32_0 = arith.constant 0 : i32
    return %c0_i32, %arg1 : i32, i32
  }
  func.func @transform_3(%arg0: i32, %arg1: i32, %arg2: i32) -> (i32, i32) {
    %c0_i32 = arith.constant 0 : i32
    return %arg0, %arg1 : i32, i32
  }
}

</mosaic_0001>

<llo_original>
// kernel: bert_forward.14
$region0: #{bert_forward.14}
  #allocation0 [shape = 'u32[]', space=smem, size = 0x4, offset = 0x4, fixed_abs, tag = 'smem constant byte address 0x4 - core index']
  #allocation1 [shape = 'u32[144,128]{1,0:T(1,128)}', space=vmem, size = 0x12000, scoped, tag = 'internal scratch']
  #allocation2 [shape = 'f32[16,256]{1,0:T(8,128)}', space=vmem, size = 0x4000, scoped, tag = 'scratch operand']
  %s0 = inlined_call_operand.vmem [shape: bf16[16,128], index: 0, kind: input, shape index: {}]
  %s1 = inlined_call_operand.vmem [shape: bf16[128,256], index: 1, kind: input, shape index: {}]
  %s2 = inlined_call_operand.vmem [shape: f32[1,256], index: 2, kind: input, shape index: {}]
  %s3 = inlined_call_operand.vmem [shape: bf16[16,256], index: 3, kind: output, shape index: {}]
  %s4 = sld [smem:[#allocation0]]
  $region30: #{bert_forward.14} parent=0
    _
  %s6 = ssub.s32 1, %s4
  %s7 = scalar_select 0, %s6, %s4
  // Predicated region
  $region2: #{bert_forward.14} parent=0 // pred_check
    _
  $region3: #{bert_forward.14} parent=0 // pred_check_branch
    %9 = sbr.rel (0) target = $region5
  $region4: #{bert_forward.14} parent=0 // pred_region
    _
  $region5: #{bert_forward.14} parent=0 // pred_fallthru
    _
  // Predicated region
  $region6: #{bert_forward.14} parent=0 // pred_check
    _
  $region7: #{bert_forward.14} parent=0 // pred_check_branch
    %11 = sbr.rel (0) target = $region9
  $region8: #{bert_forward.14} parent=0 // pred_region
    _
  $region9: #{bert_forward.14} parent=0 // pred_fallthru
    _
  // Predicated region
  $region10: #{bert_forward.14} parent=0 // pred_check
    _
  $region11: #{bert_forward.14} parent=0 // pred_check_branch
    %13 = sbr.rel (0) target = $region13
  $region12: #{bert_forward.14} parent=0 // pred_region
    _
  $region13: #{bert_forward.14} parent=0 // pred_fallthru
    _
  %p15 = scmp.eq.s32.totalorder 0, 0
  // Predicated region
  $region14: #{bert_forward.14} parent=0 // pred_check
    %p16 = pneg %p15
  $region15: #{bert_forward.14} parent=0 // pred_check_branch
    %18 = sbr.rel (%p16) target = $region17
  $region16: #{bert_forward.14} parent=0 // pred_region
    %19 = vst [vmem:[#allocation2] sm:$0xff] 0.0
    %20 = vst [vmem:[#allocation2 + $0x8] sm:$0xff] 0.0
    %21 = vst [vmem:[#allocation2 + $0x10] sm:$0xff] 0.0
    %22 = vst [vmem:[#allocation2 + $0x18] sm:$0xff] 0.0
  $region17: #{bert_forward.14} parent=0 // pred_fallthru
    _
  %v23 = vld [vmem:[#allocation2] sm:$0xff]
  %v24 = vld [vmem:[#allocation2 + $0x8] sm:$0xff]
  %v25 = vld [vmem:[#allocation2 + $0x10] sm:$0xff]
  %v26 = vld [vmem:[#allocation2 + $0x18] sm:$0xff]
  %v27 = vld [vmem:[%s0] sm:$0xf]
  %v28 = vld [vmem:[%s0 + $0x4] sm:$0xf]
  %v29 = vld [vmem:[%s1] sm:$0xff]
  %v30 = vld [vmem:[%s1 + $0x8] sm:$0xff]
  %v31 = vld [vmem:[%s1 + $0x10] sm:$0xff]
  %v32 = vld [vmem:[%s1 + $0x18] sm:$0xff]
  %v33 = vld [vmem:[%s1 + $0x20] sm:$0xff]
  %v34 = vld [vmem:[%s1 + $0x28] sm:$0xff]
  %v35 = vld [vmem:[%s1 + $0x30] sm:$0xff]
  %v36 = vld [vmem:[%s1 + $0x38] sm:$0xff]
  %v37 = vld [vmem:[%s1 + $0x40] sm:$0xff]
  %v38 = vld [vmem:[%s1 + $0x48] sm:$0xff]
  %v39 = vld [vmem:[%s1 + $0x50] sm:$0xff]
  %v40 = vld [vmem:[%s1 + $0x58] sm:$0xff]
  %v41 = vld [vmem:[%s1 + $0x60] sm:$0xff]
  %v42 = vld [vmem:[%s1 + $0x68] sm:$0xff]
  %v43 = vld [vmem:[%s1 + $0x70] sm:$0xff]
  %v44 = vld [vmem:[%s1 + $0x78] sm:$0xff]
  %v47 = vunpack.c.l.b16 %v27
  %v48 = vunpack.c.l.b16 %v28
  %v49 = vpack.c.b16 %v48, %v47
  %v67 = vunpack.c.l.b16 %v29
  %v68 = vunpack.c.h.b16 %v29
  %v69 = vunpack.c.l.b16 %v30
  %v70 = vunpack.c.h.b16 %v30
  %v71 = vunpack.c.l.b16 %v31
  %v72 = vunpack.c.h.b16 %v31
  %v73 = vunpack.c.l.b16 %v32
  %v74 = vunpack.c.h.b16 %v32
  %v75 = vunpack.c.l.b16 %v33
  %v76 = vunpack.c.h.b16 %v33
  %v77 = vunpack.c.l.b16 %v34
  %v78 = vunpack.c.h.b16 %v34
  %v79 = vunpack.c.l.b16 %v35
  %v80 = vunpack.c.h.b16 %v35
  %v81 = vunpack.c.l.b16 %v36
  %v82 = vunpack.c.h.b16 %v36
  %v83 = vunpack.c.l.b16 %v37
  %v84 = vunpack.c.h.b16 %v37
  %v85 = vunpack.c.l.b16 %v38
  %v86 = vunpack.c.h.b16 %v38
  %v87 = vunpack.c.l.b16 %v39
  %v88 = vunpack.c.h.b16 %v39
  %v89 = vunpack.c.l.b16 %v40
  %v90 = vunpack.c.h.b16 %v40
  %v91 = vunpack.c.l.b16 %v41
  %v92 = vunpack.c.h.b16 %v41
  %v93 = vunpack.c.l.b16 %v42
  %v94 = vunpack.c.h.b16 %v42
  %v95 = vunpack.c.l.b16 %v43
  %v96 = vunpack.c.h.b16 %v43
  %v97 = vunpack.c.l.b16 %v44
  %v98 = vunpack.c.h.b16 %v44
  %v99 = vpack.c.b16 %v69, %v67
  %v100 = vpack.c.b16 %v70, %v68
  %v101 = vpack.c.b16 %v73, %v71
  %v102 = vpack.c.b16 %v74, %v72
  %v103 = vpack.c.b16 %v77, %v75
  %v104 = vpack.c.b16 %v78, %v76
  %v105 = vpack.c.b16 %v81, %v79
  %v106 = vpack.c.b16 %v82, %v80
  %v107 = vpack.c.b16 %v85, %v83
  %v108 = vpack.c.b16 %v86, %v84
  %v109 = vpack.c.b16 %v89, %v87
  %v110 = vpack.c.b16 %v90, %v88
  %v111 = vpack.c.b16 %v93, %v91
  %v112 = vpack.c.b16 %v94, %v92
  %v113 = vpack.c.b16 %v97, %v95
  %v114 = vpack.c.b16 %v98, %v96
  %131 = vmatprep.subr.bf16.mxu0 %v100
  %132 = vmatpush1.bf16.msra.mxu0 %v99
  %133 = vmatprep.subr.bf16.mxu0 %v102
  %134 = vmatpush1.bf16.msra.mxu0 %v101
  %135 = vmatprep.subr.bf16.mxu0 %v104
  %136 = vmatpush1.bf16.msra.mxu0 %v103
  %137 = vmatprep.subr.bf16.mxu0 %v106
  %138 = vmatpush1.bf16.msra.mxu0 %v105
  %139 = vmatprep.subr.bf16.mxu0 %v108
  %140 = vmatpush1.bf16.msra.mxu0 %v107
  %141 = vmatprep.subr.bf16.mxu0 %v110
  %142 = vmatpush1.bf16.msra.mxu0 %v109
  %143 = vmatprep.subr.bf16.mxu0 %v112
  %144 = vmatpush1.bf16.msra.mxu0 %v111
  %145 = vmatprep.subr.bf16.mxu0 %v114
  %146 = vmatpush1.bf16.msra.mxu0 %v113
  %147 = vmatprep.subr.bf16.mxu0 0
  %148 = vmatpush1.bf16.msra.mxu0 0
  %149 = vmatprep.subr.bf16.mxu0 0
  %150 = vmatpush1.bf16.msra.mxu0 0
  %151 = vmatprep.subr.bf16.mxu0 0
  %152 = vmatpush1.bf16.msra.mxu0 0
  %153 = vmatprep.subr.bf16.mxu0 0
  %154 = vmatpush1.bf16.msra.mxu0 0
  %155 = vmatprep.subr.bf16.mxu0 0
  %156 = vmatpush1.bf16.msra.mxu0 0
  %157 = vmatprep.subr.bf16.mxu0 0
  %158 = vmatpush1.bf16.msra.mxu0 0
  %159 = vmatprep.subr.bf16.mxu0 0
  %160 = vmatpush1.bf16.msra.mxu0 0
  %161 = vmatprep.subr.bf16.mxu0 0
  %162 = vmatpush1.bf16.msra.mxu0 0
  %163 = vmatprep.mubr.bf16.mxu0 0
  %164 = vmatmul.mubr.bf16.gmra.mrb[0].mxu0 %v49
  %v165 = vpop.f32.mrb[0].mxu0
  %v166 = vadd.f32 0.0, %v165
  %v167 = vpop.f32.mrb[0].mxu0
  %v168 = vadd.f32 0.0, %v167
  %v169 = vpop.f32.mrb[0].mxu0
  %v170 = vadd.f32 0.0, %v169
  %v171 = vpop.f32.mrb[0].mxu0
  %v172 = vadd.f32 0.0, %v171
  %173 = vdwg.mxu0
  %v174 = vadd.f32 %v23, %v166
  %v175 = vadd.f32 %v24, %v168
  %v176 = vadd.f32 %v25, %v170
  %v177 = vadd.f32 %v26, %v172
  %178 = vst [vmem:[#allocation2] sm:$0xff] %v174
  %179 = vst [vmem:[#allocation2 + $0x8] sm:$0xff] %v175
  %180 = vst [vmem:[#allocation2 + $0x10] sm:$0xff] %v176
  %181 = vst [vmem:[#allocation2 + $0x18] sm:$0xff] %v177
  // Predicated region
  $region18: #{bert_forward.14} parent=0 // pred_check
    %p182 = pneg %p15
  $region19: #{bert_forward.14} parent=0 // pred_check_branch
    %184 = sbr.rel (%p182) target = $region21
  $region20: #{bert_forward.14} parent=0 // pred_region
    %v185 = vld [vmem:[#allocation2] sm:$0xff]
    %v186 = vld [vmem:[#allocation2 + $0x8] sm:$0xff]
    %v187 = vld [vmem:[#allocation2 + $0x10] sm:$0xff]
    %v188 = vld [vmem:[#allocation2 + $0x18] sm:$0xff]
    %v189 = vld [vmem:[%s2] sm:$0x3]
    %v191 = vlaneseq
    %v192 = vshrl.u32 %v191, 7
    %v193 = vsub.s32 0, %v192
    %v194 = vrot.slane %v189, %v193
    %v195 = vlaneseq
    %v196 = vshrl.u32 %v195, 7
    %v197 = vsub.s32 1, %v196
    %v198 = vrot.slane %v189, %v197
    %v201 = vadd.f32 %v185, %v194
    %v202 = vadd.f32 %v186, %v198
    %v203 = vadd.f32 %v187, %v194
    %v204 = vadd.f32 %v188, %v198
    %v205 = vpack.c.bf16 %v203, %v201
    %v206 = vpack.c.bf16 %v204, %v202
    %v209 = vunpack.c.l.b16 %v205
    %v210 = vunpack.c.l.b16 %v206
    %v211 = vunpack.c.h.b16 %v205
    %v212 = vunpack.c.h.b16 %v206
    %v213 = vpack.c.b16 %v210, %v209
    %v214 = vpack.c.b16 %v212, %v211
    %217 = vst [vmem:[%s3] sm:$0xff] %v213
    %218 = vst [vmem:[%s3 + $0x8] sm:$0xff] %v214
  $region21: #{bert_forward.14} parent=0 // pred_fallthru
    _
  // Predicated region
  $region22: #{bert_forward.14} parent=0 // pred_check
    _
  $region23: #{bert_forward.14} parent=0 // pred_check_branch
    %220 = sbr.rel (0) target = $region25
  $region24: #{bert_forward.14} parent=0 // pred_region
    _
  $region25: #{bert_forward.14} parent=0 // pred_fallthru
    _
  // Predicated region
  $region26: #{bert_forward.14} parent=0 // pred_check
    _
  $region27: #{bert_forward.14} parent=0 // pred_check_branch
    %222 = sbr.rel (0) target = $region29
  $region28: #{bert_forward.14} parent=0 // pred_region
    _
  $region29: #{bert_forward.14} parent=0 // pred_fallthru
    _

// kernel: bert_forward.15
$region0: #{bert_forward.15}
  #allocation0 [shape = 'u32[]', space=smem, size = 0x4, offset = 0x4, fixed_abs, tag = 'smem constant byte address 0x4 - core index']
  #allocation1 [shape = 'u32[144,128]{1,0:T(1,128)}', space=vmem, size = 0x12000, scoped, tag = 'internal scratch']
  #allocation2 [shape = 's32[1]{0}', space=sflag, size = 0x4, scoped, tag = 'scoped memory for bert_forward.15']
  #allocation3 [shape = 'u8[512]{0}', space=smem, size = 0x200, scoped, tag = 'prefetched SMEM operand 0']
  %s0 = inlined_call_operand.vmem [shape: s32[2], index: 0, kind: input, shape index: {}]
  %s1 = inlined_call_operand.vmem [shape: bf16[2,8,192], index: 1, kind: input, shape index: {}]
  %s2 = inlined_call_operand.vmem [shape: bf16[2,8,64], index: 2, kind: output, shape index: {}]
  %s3 = sld [smem:[#allocation0]]
  $region37: #{bert_forward.15} parent=0
    _
  %s5 = ssub.s32 1, %s3
  %s6 = scalar_select 0, %s5, %s3
  %s7 = sshll.u32 %s0, 4
  %s8 = int_to_ptr.vmem [resolvable:$true] %s7
  %10 = dma.vmem_to_smem %s8, 16, [#allocation3], [#allocation2]
  %11 = dma.done [#allocation2], 16
  %12 = sfence
  loop: start=0, step=1, limit=4
  $region2: #{bert_forward.15} parent=0 // loop_pre_header
    _
  $region3: #{bert_forward.15} parent=0 // loop_header
    %s14 = sphi 0, %s18
    %p15 = scmp.ge.s32.totalorder %s14, 4
    %s24 = sphi 0, %s26
    %s27 = sphi 0, %s24
    %s28 = sphi 0, %s27
    %s44 = sphi 0, %s28
    %s50 = sphi 0, %s52
    %s53 = sphi 0, %s50
    %s54 = sphi 0, %s53
    %s70 = sphi 0, %s54
  $region4: #{bert_forward.15} parent=0 // loop_header_branch
    %17 = sbr.rel (%p15) target = $region8
  $region5: #{bert_forward.15} parent=0 // loop_body
    %s19 = ssub.s32 %s14, 1
    %s20 = ssub.s32 %s14, 2
    %s21 = sadd.s32 %s14, 1
    %s22 = ssub.s32 %s14, %s21
    %p23 = scmp.eq.s32.totalorder %s22, 0
    %s25 = sadd.s32 %s24, 1
    %s26 = scalar_select %p23, %s24, %s25
    %p29 = pneg %p23
    %p30 = scmp.eq.s32.totalorder %s14, 1
    %p31 = por %p29, %p30
    %p32 = scmp.ne.s32.totalorder %s24, %s27
    %p33 = scmp.eq.s32.totalorder %s14, 0
    %p34 = por %p32, %p33
    %p35 = scmp.ne.s32.totalorder %s24, %s27
    %p36 = scmp.eq.s32.totalorder %s19, 1
    %p37 = por %p35, %p36
    %p38 = scmp.ne.s32.totalorder %s27, %s28
    %p39 = scmp.eq.s32.totalorder %s19, 0
    %p40 = por %p38, %p39
    %p41 = scmp.ne.s32.totalorder %s27, %s28
    %p42 = scmp.eq.s32.totalorder %s20, 1
    %p43 = por %p41, %p42
    %p45 = scmp.ne.s32.totalorder %s28, %s44
    %p46 = scmp.eq.s32.totalorder %s20, 0
    %p47 = por %p45, %p46
    %s48 = ssub.s32 %s14, %s21
    %p49 = scmp.eq.s32.totalorder %s48, 0
    %s51 = sadd.s32 %s50, 1
    %s52 = scalar_select %p49, %s50, %s51
    %p55 = pneg %p49
    %p56 = scmp.eq.s32.totalorder %s14, 1
    %p57 = por %p55, %p56
    %p58 = scmp.ne.s32.totalorder %s50, %s53
    %p59 = scmp.eq.s32.totalorder %s14, 0
    %p60 = por %p58, %p59
    %p61 = scmp.ne.s32.totalorder %s50, %s53
    %p62 = scmp.eq.s32.totalorder %s19, 1
    %p63 = por %p61, %p62
    %p64 = scmp.ne.s32.totalorder %s53, %s54
    %p65 = scmp.eq.s32.totalorder %s19, 0
    %p66 = por %p64, %p65
    %p67 = scmp.ne.s32.totalorder %s53, %s54
    %p68 = scmp.eq.s32.totalorder %s20, 1
    %p69 = por %p67, %p68
    %p71 = scmp.ne.s32.totalorder %s54, %s70
    %p72 = scmp.eq.s32.totalorder %s20, 0
    %p73 = por %p71, %p72
    %p74 = scmp.le.s32.totalorder 1, %s14
    %p75 = scmp.lt.s32.totalorder %s14, 3
    %p76 = pnand %p74, %p75
    %p77 = pneg %p76
    // Predicated region
    $region9: #{bert_forward.15} parent=5 // pred_check
      _
    $region10: #{bert_forward.15} parent=5 // pred_check_branch
      %79 = sbr.rel (%p76) target = $region12
    $region11: #{bert_forward.15} parent=5 // pred_region
      %s80 = ssub.s32 %s14, 1
    $region12: #{bert_forward.15} parent=5 // pred_fallthru
      _
    %p81 = scmp.lt.s32.totalorder %s14, 2
    // Predicated region
    $region13: #{bert_forward.15} parent=5 // pred_check
      %p82 = pneg %p81
    $region14: #{bert_forward.15} parent=5 // pred_check_branch
      %84 = sbr.rel (%p82) target = $region16
    $region15: #{bert_forward.15} parent=5 // pred_region
      // Predicated region
      $region17: #{bert_forward.15} parent=15 // pred_check
        %p85 = pneg %p34
      $region18: #{bert_forward.15} parent=15 // pred_check_branch
        %87 = sbr.rel (%p85) target = $region20
      $region19: #{bert_forward.15} parent=15 // pred_region
        %p88 = scmp.lt.s32.totalorder %s14, 1
        %s89 = scalar_select %p88, %s14, 1
        %s90 = smul.addr %s89, 2
        %s91 = smul.addr %s90, 4
        %s92 = scalar_lea.vmem %s1, %s91
      $region20: #{bert_forward.15} parent=15 // pred_fallthru
        _
    $region16: #{bert_forward.15} parent=5 // pred_fallthru
      _
    %p93 = scmp.le.s32.totalorder 1, %s14
    %p94 = scmp.lt.s32.totalorder %s14, 3
    %p95 = pnand %p93, %p94
    %p96 = pneg %p95
    // Predicated region
    $region21: #{bert_forward.15} parent=5 // pred_check
      _
    $region22: #{bert_forward.15} parent=5 // pred_check_branch
      %98 = sbr.rel (%p95) target = $region24
    $region23: #{bert_forward.15} parent=5 // pred_region
      %s99 = ssub.s32 %s14, 1
      %p100 = scmp.lt.s32.totalorder %s19, 1
      %s101 = scalar_select %p100, %s19, 1
      %s102 = smul.addr %s101, 2
      %s103 = smul.addr %s102, 4
      %s104 = scalar_lea.vmem %s1, %s103
      %p105 = pneg %p40
      %p106 = pneg %p37
      %p107 = pneg %p66
      %p108 = pneg %p63
      %p109 = scmp.lt.s32.totalorder %s19, 1
      %s110 = scalar_select %p109, %s19, 1
      %s111 = smul.addr %s110, 4
      %s112 = scalar_lea.vmem %s2, %s111
      %p113 = scmp.lt.s32.totalorder %s19, 1
      %s114 = scalar_select %p113, %s19, 1
      %s115 = smul.addr %s114, 2
      %s116 = smul.addr %s115, 4
      %s117 = scalar_lea.vmem %s1, %s116
      %p118 = scmp.lt.s32.totalorder %s19, 1
      %s119 = scalar_select %p118, %s19, 1
      %s120 = smul.addr %s119, 4
      %s121 = scalar_lea.vmem %s2, %s120
      %s124 = sld [smem:[#allocation3 + %s19]]
      %v125 = vld [vmem:[%s117] sm:$0xff]
      %v126 = vmul.bf16 %v125, 1043676725
      %v127 = vlaneseq
      %v128 = vand.u32 %v127, 127
      %v129 = vstv %s124
      %vm130 = vcmp.lt.s32.totalorder %v128, %v129
      %v132 = vunpack.c.l.b16 %v125
      %v133 = vpack.c.b16 %v132, %v132
      %134 = vrot.lane.b32.xlu0 %v133, 64
      %v135 = vpop.permute.xlu0 %134
      %vm136 = vcmask 261120
      %v138 = vsel %vm136, %v126, 0
      %v141 = vsel %vm136, %v135, 0
      %143 = vmatprep.subr.bf16.mxu0 0
      %144 = vmatpush1.bf16.xpose.msra.mxu0 %v141
      %145 = vmatprep.subr.bf16.mxu0 0
      %146 = vmatpush1.bf16.xpose.msra.mxu0 0
      %147 = vmatprep.subr.bf16.mxu0 0
      %148 = vmatpush1.bf16.xpose.msra.mxu0 0
      %149 = vmatprep.subr.bf16.mxu0 0
      %150 = vmatpush1.bf16.xpose.msra.mxu0 0
      %151 = vmatprep.subr.bf16.mxu0 0
      %152 = vmatpush1.bf16.xpose.msra.mxu0 0
      %153 = vmatprep.subr.bf16.mxu0 0
      %154 = vmatpush1.bf16.xpose.msra.mxu0 0
      %155 = vmatprep.subr.bf16.mxu0 0
      %156 = vmatpush1.bf16.xpose.msra.mxu0 0
      %157 = vmatprep.subr.bf16.mxu0 0
      %158 = vmatpush1.bf16.xpose.msra.mxu0 0
      %159 = vmatprep.subr.bf16.mxu0 0
      %160 = vmatpush1.bf16.xpose.msra.mxu0 0
      %161 = vmatprep.subr.bf16.mxu0 0
      %162 = vmatpush1.bf16.xpose.msra.mxu0 0
      %163 = vmatprep.subr.bf16.mxu0 0
      %164 = vmatpush1.bf16.xpose.msra.mxu0 0
      %165 = vmatprep.subr.bf16.mxu0 0
      %166 = vmatpush1.bf16.xpose.msra.mxu0 0
      %167 = vmatprep.subr.bf16.mxu0 0
      %168 = vmatpush1.bf16.xpose.msra.mxu0 0
      %169 = vmatprep.subr.bf16.mxu0 0
      %170 = vmatpush1.bf16.xpose.msra.mxu0 0
      %171 = vmatprep.subr.bf16.mxu0 0
      %172 = vmatpush1.bf16.xpose.msra.mxu0 0
      %173 = vmatprep.subr.bf16.mxu0 0
      %174 = vmatpush1.bf16.xpose.msra.mxu0 0
      %175 = vmatprep.mubr.bf16.mxu0 0
      %176 = vmatmul.mubr.bf16.gmra.mrb[0].mxu0 %v138
      %v177 = vpop.f32.mrb[0].mxu0
      %v178 = vadd.f32 0.0, %v177
      %v179 = vpop.f32.mrb[0].mxu0
      %v180 = vpop.f32.mrb[0].mxu0
      %v181 = vpop.f32.mrb[0].mxu0
      %182 = vdwg.mxu0
      %v183 = vsel %vm130, %v178, -1000000.0
      %vm184 = vcmask 64512
      %v185 = vsel %vm184, %v183, -inf
      %186 = vmax.xlane.f32.xlu0 %v185
      %v187 = vpop.xlane.xlu0 %186
      %v188 = vsub.f32 %v183, %v187
      %v189 = vmul.f32 %v188, 1.442695
      %v190 = vpow.pop %v189
      %v191 = vsel %vm184, %v190, 0.0
      %192 = vadd.xlane.f32.xlu0 %v191
      %v193 = vpop.xlane.xlu0 %192
      %v194 = vrcp.pop %v193
      %v195 = vmul.f32 %v190, %v194
      %v196 = vpack.c.bf16 %v195, %v195
      %v197 = vunpack.c.h.b16 %v125
      %v198 = vpack.c.b16 %v197, %v197
      %v200 = vsel %vm184, %v196, 0
      %vm202 = vcmask 1043456
      %v204 = vsel %vm202, %v198, 0
      %206 = vmatprep.subr.bf16.mxu0 0
      %207 = vmatpush1.bf16.msra.mxu0 %v204
      %208 = vmatprep.subr.bf16.mxu0 0
      %209 = vmatpush1.bf16.msra.mxu0 0
      %210 = vmatprep.subr.bf16.mxu0 0
      %211 = vmatpush1.bf16.msra.mxu0 0
      %212 = vmatprep.subr.bf16.mxu0 0
      %213 = vmatpush1.bf16.msra.mxu0 0
      %214 = vmatprep.subr.bf16.mxu0 0
      %215 = vmatpush1.bf16.msra.mxu0 0
      %216 = vmatprep.subr.bf16.mxu0 0
      %217 = vmatpush1.bf16.msra.mxu0 0
      %218 = vmatprep.subr.bf16.mxu0 0
      %219 = vmatpush1.bf16.msra.mxu0 0
      %220 = vmatprep.subr.bf16.mxu0 0
      %221 = vmatpush1.bf16.msra.mxu0 0
      %222 = vmatprep.subr.bf16.mxu0 0
      %223 = vmatpush1.bf16.msra.mxu0 0
      %224 = vmatprep.subr.bf16.mxu0 0
      %225 = vmatpush1.bf16.msra.mxu0 0
      %226 = vmatprep.subr.bf16.mxu0 0
      %227 = vmatpush1.bf16.msra.mxu0 0
      %228 = vmatprep.subr.bf16.mxu0 0
      %229 = vmatpush1.bf16.msra.mxu0 0
      %230 = vmatprep.subr.bf16.mxu0 0
      %231 = vmatpush1.bf16.msra.mxu0 0
      %232 = vmatprep.subr.bf16.mxu0 0
      %233 = vmatpush1.bf16.msra.mxu0 0
      %234 = vmatprep.subr.bf16.mxu0 0
      %235 = vmatpush1.bf16.msra.mxu0 0
      %236 = vmatprep.subr.bf16.mxu0 0
      %237 = vmatpush1.bf16.msra.mxu0 0
      %238 = vmatprep.mubr.bf16.mxu0 0
      %239 = vmatmul.mubr.bf16.gmra.mrb[0].mxu0 %v200
      %v240 = vpop.f32.mrb[0].mxu0
      %v241 = vadd.f32 0.0, %v240
      %v242 = vpop.f32.mrb[0].mxu0
      %v243 = vpop.f32.mrb[0].mxu0
      %v244 = vpop.f32.mrb[0].mxu0
      %245 = vdwg.mxu0
      %v247 = vunpack.c.l.b16 %v126
      %v248 = vpack.c.b16 %v247, %v247
      %249 = vrot.lane.b32.xlu0 %v248, 96
      %v250 = vpop.permute.xlu0 %249
      %251 = vrot.lane.b32.xlu0 %v133, 32
      %v252 = vpop.permute.xlu0 %251
      %v254 = vsel %vm136, %v250, 0
      %v257 = vsel %vm136, %v252, 0
      %259 = vmatprep.subr.bf16.mxu0 0
      %260 = vmatpush1.bf16.xpose.msra.mxu0 %v257
      %261 = vmatprep.subr.bf16.mxu0 0
      %262 = vmatpush1.bf16.xpose.msra.mxu0 0
      %263 = vmatprep.subr.bf16.mxu0 0
      %264 = vmatpush1.bf16.xpose.msra.mxu0 0
      %265 = vmatprep.subr.bf16.mxu0 0
      %266 = vmatpush1.bf16.xpose.msra.mxu0 0
      %267 = vmatprep.subr.bf16.mxu0 0
      %268 = vmatpush1.bf16.xpose.msra.mxu0 0
      %269 = vmatprep.subr.bf16.mxu0 0
      %270 = vmatpush1.bf16.xpose.msra.mxu0 0
      %271 = vmatprep.subr.bf16.mxu0 0
      %272 = vmatpush1.bf16.xpose.msra.mxu0 0
      %273 = vmatprep.subr.bf16.mxu0 0
      %274 = vmatpush1.bf16.xpose.msra.mxu0 0
      %275 = vmatprep.subr.bf16.mxu0 0
      %276 = vmatpush1.bf16.xpose.msra.mxu0 0
      %277 = vmatprep.subr.bf16.mxu0 0
      %278 = vmatpush1.bf16.xpose.msra.mxu0 0
      %279 = vmatprep.subr.bf16.mxu0 0
      %280 = vmatpush1.bf16.xpose.msra.mxu0 0
      %281 = vmatprep.subr.bf16.mxu0 0
      %282 = vmatpush1.bf16.xpose.msra.mxu0 0
      %283 = vmatprep.subr.bf16.mxu0 0
      %284 = vmatpush1.bf16.xpose.msra.mxu0 0
      %285 = vmatprep.subr.bf16.mxu0 0
      %286 = vmatpush1.bf16.xpose.msra.mxu0 0
      %287 = vmatprep.subr.bf16.mxu0 0
      %288 = vmatpush1.bf16.xpose.msra.mxu0 0
      %289 = vmatprep.subr.bf16.mxu0 0
      %290 = vmatpush1.bf16.xpose.msra.mxu0 0
      %291 = vmatprep.mubr.bf16.mxu0 0
      %292 = vmatmul.mubr.bf16.gmra.mrb[0].mxu0 %v254
      %v293 = vpop.f32.mrb[0].mxu0
      %v294 = vadd.f32 0.0, %v293
      %v295 = vpop.f32.mrb[0].mxu0
      %v296 = vpop.f32.mrb[0].mxu0
      %v297 = vpop.f32.mrb[0].mxu0
      %298 = vdwg.mxu0
      %v299 = vsel %vm130, %v294, -1000000.0
      %v300 = vsel %vm184, %v299, -inf
      %301 = vmax.xlane.f32.xlu0 %v300
      %v302 = vpop.xlane.xlu0 %301
      %v303 = vsub.f32 %v299, %v302
      %v304 = vmul.f32 %v303, 1.442695
      %v305 = vpow.pop %v304
      %v306 = vsel %vm184, %v305, 0.0
      %307 = vadd.xlane.f32.xlu0 %v306
      %v308 = vpop.xlane.xlu0 %307
      %v309 = vrcp.pop %v308
      %v310 = vmul.f32 %v305, %v309
      %v311 = vpack.c.bf16 %v310, %v310
      %312 = vrot.lane.b32.xlu0 %v198, 96
      %v313 = vpop.permute.xlu0 %312
      %v315 = vsel %vm184, %v311, 0
      %v318 = vsel %vm202, %v313, 0
      %320 = vmatprep.subr.bf16.mxu0 0
      %321 = vmatpush1.bf16.msra.mxu0 %v318
      %322 = vmatprep.subr.bf16.mxu0 0
      %323 = vmatpush1.bf16.msra.mxu0 0
      %324 = vmatprep.subr.bf16.mxu0 0
      %325 = vmatpush1.bf16.msra.mxu0 0
      %326 = vmatprep.subr.bf16.mxu0 0
      %327 = vmatpush1.bf16.msra.mxu0 0
      %328 = vmatprep.subr.bf16.mxu0 0
      %329 = vmatpush1.bf16.msra.mxu0 0
      %330 = vmatprep.subr.bf16.mxu0 0
      %331 = vmatpush1.bf16.msra.mxu0 0
      %332 = vmatprep.subr.bf16.mxu0 0
      %333 = vmatpush1.bf16.msra.mxu0 0
      %334 = vmatprep.subr.bf16.mxu0 0
      %335 = vmatpush1.bf16.msra.mxu0 0
      %336 = vmatprep.subr.bf16.mxu0 0
      %337 = vmatpush1.bf16.msra.mxu0 0
      %338 = vmatprep.subr.bf16.mxu0 0
      %339 = vmatpush1.bf16.msra.mxu0 0
      %340 = vmatprep.subr.bf16.mxu0 0
      %341 = vmatpush1.bf16.msra.mxu0 0
      %342 = vmatprep.subr.bf16.mxu0 0
      %343 = vmatpush1.bf16.msra.mxu0 0
      %344 = vmatprep.subr.bf16.mxu0 0
      %345 = vmatpush1.bf16.msra.mxu0 0
      %346 = vmatprep.subr.bf16.mxu0 0
      %347 = vmatpush1.bf16.msra.mxu0 0
      %348 = vmatprep.subr.bf16.mxu0 0
      %349 = vmatpush1.bf16.msra.mxu0 0
      %350 = vmatprep.subr.bf16.mxu0 0
      %351 = vmatpush1.bf16.msra.mxu0 0
      %352 = vmatprep.mubr.bf16.mxu0 0
      %353 = vmatmul.mubr.bf16.gmra.mrb[0].mxu0 %v315
      %v354 = vpop.f32.mrb[0].mxu0
      %v355 = vadd.f32 0.0, %v354
      %v356 = vpop.f32.mrb[0].mxu0
      %v357 = vpop.f32.mrb[0].mxu0
      %v358 = vpop.f32.mrb[0].mxu0
      %359 = vdwg.mxu0
      %361 = vrot.lane.b32.xlu0 %v355, 32
      %v362 = vpop.permute.xlu0 %361
      %v364 = vsel %vm136, %v241, %v362
      %v365 = vpack.c.bf16 %v364, %v364
      %vm366 = vcmask 519168
      %367 = vst.msk [vmem:[%s121] sm:$0xf] %vm366, %v365
      %p368 = scmp.lt.s32.totalorder %s19, 1
      %s369 = scalar_select %p368, %s19, 1
      %s370 = smul.addr %s369, 4
      %s371 = scalar_lea.vmem %s2, %s370
      // Predicated region
      $region25: #{bert_forward.15} parent=23 // pred_check
        %p372 = pneg %p63
      $region26: #{bert_forward.15} parent=23 // pred_check_branch
        %374 = sbr.rel (%p372) target = $region28
      $region27: #{bert_forward.15} parent=23 // pred_region
        _
      $region28: #{bert_forward.15} parent=23 // pred_fallthru
        _
    $region24: #{bert_forward.15} parent=5 // pred_fallthru
      _
    %p375 = scmp.le.s32.totalorder 2, %s14
    // Predicated region
    $region29: #{bert_forward.15} parent=5 // pred_check
      %p376 = pneg %p375
    $region30: #{bert_forward.15} parent=5 // pred_check_branch
      %378 = sbr.rel (%p376) target = $region32
    $region31: #{bert_forward.15} parent=5 // pred_region
      %s379 = ssub.s32 %s14, 2
      // Predicated region
      $region33: #{bert_forward.15} parent=31 // pred_check
        %p380 = pneg %p69
      $region34: #{bert_forward.15} parent=31 // pred_check_branch
        %382 = sbr.rel (%p380) target = $region36
      $region35: #{bert_forward.15} parent=31 // pred_region
        %p383 = scmp.lt.s32.totalorder %s20, 1
        %s384 = scalar_select %p383, %s20, 1
        %s385 = smul.addr %s384, 4
        %s386 = scalar_lea.vmem %s2, %s385
      $region36: #{bert_forward.15} parent=31 // pred_fallthru
        _
    $region32: #{bert_forward.15} parent=5 // pred_fallthru
      _
  $region6: #{bert_forward.15} parent=0 // loop_footer
    %s18 = sadd.s32 1, %s14
  $region7: #{bert_forward.15} parent=0 // loop_footer_branch
    %13 = sbr.rel target = $region3
  $region8: #{bert_forward.15} parent=0 // loop_exit
    _

// kernel: bert_forward.17
$region0: #{bert_forward.17}
  #allocation0 [shape = 'u32[]', space=smem, size = 0x4, offset = 0x4, fixed_abs, tag = 'smem constant byte address 0x4 - core index']
  #allocation1 [shape = 'u32[144,128]{1,0:T(1,128)}', space=vmem, size = 0x12000, scoped, tag = 'internal scratch']
  #allocation2 [shape = 'f32[16,128]{1,0:T(8,128)}', space=vmem, size = 0x2000, scoped, tag = 'scratch operand']
  %s0 = inlined_call_operand.vmem [shape: bf16[16,128], index: 0, kind: input, shape index: {}]
  %s1 = inlined_call_operand.vmem [shape: bf16[128,128], index: 1, kind: input, shape index: {}]
  %s2 = inlined_call_operand.vmem [shape: f32[1,128], index: 2, kind: input, shape index: {}]
  %s3 = inlined_call_operand.vmem [shape: bf16[16,128], index: 3, kind: output, shape index: {}]
  %s4 = sld [smem:[#allocation0]]
  $region30: #{bert_forward.17} parent=0
    _
  %s6 = ssub.s32 1, %s4
  %s7 = scalar_select 0, %s6, %s4
  // Predicated region
  $region2: #{bert_forward.17} parent=0 // pred_check
    _
  $region3: #{bert_forward.17} parent=0 // pred_check_branch
    %9 = sbr.rel (0) target = $region5
  $region4: #{bert_forward.17} parent=0 // pred_region
    _
  $region5: #{bert_forward.17} parent=0 // pred_fallthru
    _
  // Predicated region
  $region6: #{bert_forward.17} parent=0 // pred_check
    _
  $region7: #{bert_forward.17} parent=0 // pred_check_branch
    %11 = sbr.rel (0) target = $region9
  $region8: #{bert_forward.17} parent=0 // pred_region
    _
  $region9: #{bert_forward.17} parent=0 // pred_fallthru
    _
  // Predicated region
  $region10: #{bert_forward.17} parent=0 // pred_check
    _
  $region11: #{bert_forward.17} parent=0 // pred_check_branch
    %13 = sbr.rel (0) target = $region13
  $region12: #{bert_forward.17} parent=0 // pred_region
    _
  $region13: #{bert_forward.17} parent=0 // pred_fallthru
    _
  %p15 = scmp.eq.s32.totalorder 0, 0
  // Predicated region
  $region14: #{bert_forward.17} parent=0 // pred_check
    %p16 = pneg %p15
  $region15: #{bert_forward.17} parent=0 // pred_check_branch
    %18 = sbr.rel (%p16) target = $region17
  $region16: #{bert_forward.17} parent=0 // pred_region
    %19 = vst [vmem:[#allocation2] sm:$0xff] 0.0
    %20 = vst [vmem:[#allocation2 + $0x8] sm:$0xff] 0.0
  $region17: #{bert_forward.17} parent=0 // pred_fallthru
    _
  %v21 = vld [vmem:[#allocation2] sm:$0xff]
  %v22 = vld [vmem:[#allocation2 + $0x8] sm:$0xff]
  %v23 = vld [vmem:[%s0] sm:$0xf]
  %v24 = vld [vmem:[%s0 + $0x4] sm:$0xf]
  %v25 = vld [vmem:[%s1] sm:$0xf]
  %v26 = vld [vmem:[%s1 + $0x4] sm:$0xf]
  %v27 = vld [vmem:[%s1 + $0x8] sm:$0xf]
  %v28 = vld [vmem:[%s1 + $0xc] sm:$0xf]
  %v29 = vld [vmem:[%s1 + $0x10] sm:$0xf]
  %v30 = vld [vmem:[%s1 + $0x14] sm:$0xf]
  %v31 = vld [vmem:[%s1 + $0x18] sm:$0xf]
  %v32 = vld [vmem:[%s1 + $0x1c] sm:$0xf]
  %v33 = vld [vmem:[%s1 + $0x20] sm:$0xf]
  %v34 = vld [vmem:[%s1 + $0x24] sm:$0xf]
  %v35 = vld [vmem:[%s1 + $0x28] sm:$0xf]
  %v36 = vld [vmem:[%s1 + $0x2c] sm:$0xf]
  %v37 = vld [vmem:[%s1 + $0x30] sm:$0xf]
  %v38 = vld [vmem:[%s1 + $0x34] sm:$0xf]
  %v39 = vld [vmem:[%s1 + $0x38] sm:$0xf]
  %v40 = vld [vmem:[%s1 + $0x3c] sm:$0xf]
  %v43 = vunpack.c.l.b16 %v23
  %v44 = vunpack.c.l.b16 %v24
  %v45 = vpack.c.b16 %v44, %v43
  %v63 = vunpack.c.l.b16 %v25
  %v64 = vunpack.c.l.b16 %v26
  %v65 = vunpack.c.l.b16 %v27
  %v66 = vunpack.c.l.b16 %v28
  %v67 = vunpack.c.l.b16 %v29
  %v68 = vunpack.c.l.b16 %v30
  %v69 = vunpack.c.l.b16 %v31
  %v70 = vunpack.c.l.b16 %v32
  %v71 = vunpack.c.l.b16 %v33
  %v72 = vunpack.c.l.b16 %v34
  %v73 = vunpack.c.l.b16 %v35
  %v74 = vunpack.c.l.b16 %v36
  %v75 = vunpack.c.l.b16 %v37
  %v76 = vunpack.c.l.b16 %v38
  %v77 = vunpack.c.l.b16 %v39
  %v78 = vunpack.c.l.b16 %v40
  %v79 = vpack.c.b16 %v64, %v63
  %v80 = vpack.c.b16 %v66, %v65
  %v81 = vpack.c.b16 %v68, %v67
  %v82 = vpack.c.b16 %v70, %v69
  %v83 = vpack.c.b16 %v72, %v71
  %v84 = vpack.c.b16 %v74, %v73
  %v85 = vpack.c.b16 %v76, %v75
  %v86 = vpack.c.b16 %v78, %v77
  %95 = vmatprep.subr.bf16.mxu0 0
  %96 = vmatpush1.bf16.msra.mxu0 %v79
  %97 = vmatprep.subr.bf16.mxu0 0
  %98 = vmatpush1.bf16.msra.mxu0 %v80
  %99 = vmatprep.subr.bf16.mxu0 0
  %100 = vmatpush1.bf16.msra.mxu0 %v81
  %101 = vmatprep.subr.bf16.mxu0 0
  %102 = vmatpush1.bf16.msra.mxu0 %v82
  %103 = vmatprep.subr.bf16.mxu0 0
  %104 = vmatpush1.bf16.msra.mxu0 %v83
  %105 = vmatprep.subr.bf16.mxu0 0
  %106 = vmatpush1.bf16.msra.mxu0 %v84
  %107 = vmatprep.subr.bf16.mxu0 0
  %108 = vmatpush1.bf16.msra.mxu0 %v85
  %109 = vmatprep.subr.bf16.mxu0 0
  %110 = vmatpush1.bf16.msra.mxu0 %v86
  %111 = vmatprep.subr.bf16.mxu0 0
  %112 = vmatpush1.bf16.msra.mxu0 0
  %113 = vmatprep.subr.bf16.mxu0 0
  %114 = vmatpush1.bf16.msra.mxu0 0
  %115 = vmatprep.subr.bf16.mxu0 0
  %116 = vmatpush1.bf16.msra.mxu0 0
  %117 = vmatprep.subr.bf16.mxu0 0
  %118 = vmatpush1.bf16.msra.mxu0 0
  %119 = vmatprep.subr.bf16.mxu0 0
  %120 = vmatpush1.bf16.msra.mxu0 0
  %121 = vmatprep.subr.bf16.mxu0 0
  %122 = vmatpush1.bf16.msra.mxu0 0
  %123 = vmatprep.subr.bf16.mxu0 0
  %124 = vmatpush1.bf16.msra.mxu0 0
  %125 = vmatprep.subr.bf16.mxu0 0
  %126 = vmatpush1.bf16.msra.mxu0 0
  %127 = vmatprep.mubr.bf16.mxu0 0
  %128 = vmatmul.mubr.bf16.gmra.mrb[0].mxu0 %v45
  %v129 = vpop.f32.mrb[0].mxu0
  %v130 = vadd.f32 0.0, %v129
  %v131 = vpop.f32.mrb[0].mxu0
  %v132 = vpop.f32.mrb[0].mxu0
  %v133 = vadd.f32 0.0, %v132
  %v134 = vpop.f32.mrb[0].mxu0
  %135 = vdwg.mxu0
  %v136 = vadd.f32 %v21, %v130
  %v137 = vadd.f32 %v22, %v133
  %138 = vst [vmem:[#allocation2] sm:$0xff] %v136
  %139 = vst [vmem:[#allocation2 + $0x8] sm:$0xff] %v137
  // Predicated region
  $region18: #{bert_forward.17} parent=0 // pred_check
    %p140 = pneg %p15
  $region19: #{bert_forward.17} parent=0 // pred_check_branch
    %142 = sbr.rel (%p140) target = $region21
  $region20: #{bert_forward.17} parent=0 // pred_region
    %v143 = vld [vmem:[#allocation2] sm:$0xff]
    %v144 = vld [vmem:[#allocation2 + $0x8] sm:$0xff]
    %v145 = vld [vmem:[%s2] sm:$0x1]
    %v147 = vlaneseq
    %v148 = vshrl.u32 %v147, 7
    %v149 = vsub.s32 0, %v148
    %v150 = vrot.slane %v145, %v149
    %v152 = vadd.f32 %v143, %v150
    %v153 = vadd.f32 %v144, %v150
    %v154 = vmax.f32 %v152, 0.0
    %v155 = vmax.f32 %v153, 0.0
    %v156 = vpack.c.bf16 %v155, %v154
    %v158 = vunpack.c.l.b16 %v156
    %v159 = vunpack.c.h.b16 %v156
    %v160 = vpack.c.b16 %v158, %v158
    %v161 = vpack.c.b16 %v159, %v159
    %164 = vst [vmem:[%s3] sm:$0xf] %v160
    %165 = vst [vmem:[%s3 + $0x4] sm:$0xf] %v161
  $region21: #{bert_forward.17} parent=0 // pred_fallthru
    _
  // Predicated region
  $region22: #{bert_forward.17} parent=0 // pred_check
    _
  $region23: #{bert_forward.17} parent=0 // pred_check_branch
    %167 = sbr.rel (0) target = $region25
  $region24: #{bert_forward.17} parent=0 // pred_region
    _
  $region25: #{bert_forward.17} parent=0 // pred_fallthru
    _
  // Predicated region
  $region26: #{bert_forward.17} parent=0 // pred_check
    _
  $region27: #{bert_forward.17} parent=0 // pred_check_branch
    %169 = sbr.rel (0) target = $region29
  $region28: #{bert_forward.17} parent=0 // pred_region
    _
  $region29: #{bert_forward.17} parent=0 // pred_fallthru
    _

// kernel: bert_forward.16
$region0: #{bert_forward.16}
  #allocation0 [shape = 'u32[]', space=smem, size = 0x4, offset = 0x4, fixed_abs, tag = 'smem constant byte address 0x4 - core index']
  #allocation1 [shape = 'u32[144,128]{1,0:T(1,128)}', space=vmem, size = 0x12000, scoped, tag = 'internal scratch']
  #allocation2 [shape = 'f32[16,128]{1,0:T(8,128)}', space=vmem, size = 0x2000, scoped, tag = 'scratch operand']
  %s0 = inlined_call_operand.vmem [shape: bf16[16,128], index: 0, kind: input, shape index: {}]
  %s1 = inlined_call_operand.vmem [shape: bf16[128,128], index: 1, kind: input, shape index: {}]
  %s2 = inlined_call_operand.vmem [shape: f32[1,128], index: 2, kind: input, shape index: {}]
  %s3 = inlined_call_operand.vmem [shape: bf16[16,128], index: 3, kind: input, shape index: {}]
  %s4 = inlined_call_operand.vmem [shape: f32[1,128], index: 4, kind: input, shape index: {}]
  %s5 = inlined_call_operand.vmem [shape: f32[1,128], index: 5, kind: input, shape index: {}]
  %s6 = inlined_call_operand.vmem [shape: bf16[16,128], index: 6, kind: output, shape index: {}]
  %s7 = sld [smem:[#allocation0]]
  $region42: #{bert_forward.16} parent=0
    _
  %s9 = ssub.s32 1, %s7
  %s10 = scalar_select 0, %s9, %s7
  // Predicated region
  $region2: #{bert_forward.16} parent=0 // pred_check
    _
  $region3: #{bert_forward.16} parent=0 // pred_check_branch
    %12 = sbr.rel (0) target = $region5
  $region4: #{bert_forward.16} parent=0 // pred_region
    _
  $region5: #{bert_forward.16} parent=0 // pred_fallthru
    _
  // Predicated region
  $region6: #{bert_forward.16} parent=0 // pred_check
    _
  $region7: #{bert_forward.16} parent=0 // pred_check_branch
    %14 = sbr.rel (0) target = $region9
  $region8: #{bert_forward.16} parent=0 // pred_region
    _
  $region9: #{bert_forward.16} parent=0 // pred_fallthru
    _
  // Predicated region
  $region10: #{bert_forward.16} parent=0 // pred_check
    _
  $region11: #{bert_forward.16} parent=0 // pred_check_branch
    %16 = sbr.rel (0) target = $region13
  $region12: #{bert_forward.16} parent=0 // pred_region
    _
  $region13: #{bert_forward.16} parent=0 // pred_fallthru
    _
  // Predicated region
  $region14: #{bert_forward.16} parent=0 // pred_check
    _
  $region15: #{bert_forward.16} parent=0 // pred_check_branch
    %18 = sbr.rel (0) target = $region17
  $region16: #{bert_forward.16} parent=0 // pred_region
    _
  $region17: #{bert_forward.16} parent=0 // pred_fallthru
    _
  // Predicated region
  $region18: #{bert_forward.16} parent=0 // pred_check
    _
  $region19: #{bert_forward.16} parent=0 // pred_check_branch
    %20 = sbr.rel (0) target = $region21
  $region20: #{bert_forward.16} parent=0 // pred_region
    _
  $region21: #{bert_forward.16} parent=0 // pred_fallthru
    _
  // Predicated region
  $region22: #{bert_forward.16} parent=0 // pred_check
    _
  $region23: #{bert_forward.16} parent=0 // pred_check_branch
    %22 = sbr.rel (0) target = $region25
  $region24: #{bert_forward.16} parent=0 // pred_region
    _
  $region25: #{bert_forward.16} parent=0 // pred_fallthru
    _
  %p24 = scmp.eq.s32.totalorder 0, 0
  // Predicated region
  $region26: #{bert_forward.16} parent=0 // pred_check
    %p25 = pneg %p24
  $region27: #{bert_forward.16} parent=0 // pred_check_branch
    %27 = sbr.rel (%p25) target = $region29
  $region28: #{bert_forward.16} parent=0 // pred_region
    %28 = vst [vmem:[#allocation2] sm:$0xff] 0.0
    %29 = vst [vmem:[#allocation2 + $0x8] sm:$0xff] 0.0
  $region29: #{bert_forward.16} parent=0 // pred_fallthru
    _
  %v30 = vld [vmem:[#allocation2] sm:$0xff]
  %v31 = vld [vmem:[#allocation2 + $0x8] sm:$0xff]
  %v32 = vld [vmem:[%s0] sm:$0xf]
  %v33 = vld [vmem:[%s0 + $0x4] sm:$0xf]
  %v34 = vld [vmem:[%s1] sm:$0xf]
  %v35 = vld [vmem:[%s1 + $0x4] sm:$0xf]
  %v36 = vld [vmem:[%s1 + $0x8] sm:$0xf]
  %v37 = vld [vmem:[%s1 + $0xc] sm:$0xf]
  %v38 = vld [vmem:[%s1 + $0x10] sm:$0xf]
  %v39 = vld [vmem:[%s1 + $0x14] sm:$0xf]
  %v40 = vld [vmem:[%s1 + $0x18] sm:$0xf]
  %v41 = vld [vmem:[%s1 + $0x1c] sm:$0xf]
  %v42 = vld [vmem:[%s1 + $0x20] sm:$0xf]
  %v43 = vld [vmem:[%s1 + $0x24] sm:$0xf]
  %v44 = vld [vmem:[%s1 + $0x28] sm:$0xf]
  %v45 = vld [vmem:[%s1 + $0x2c] sm:$0xf]
  %v46 = vld [vmem:[%s1 + $0x30] sm:$0xf]
  %v47 = vld [vmem:[%s1 + $0x34] sm:$0xf]
  %v48 = vld [vmem:[%s1 + $0x38] sm:$0xf]
  %v49 = vld [vmem:[%s1 + $0x3c] sm:$0xf]
  %v52 = vunpack.c.l.b16 %v32
  %v53 = vunpack.c.l.b16 %v33
  %v54 = vpack.c.b16 %v53, %v52
  %v72 = vunpack.c.l.b16 %v34
  %v73 = vunpack.c.l.b16 %v35
  %v74 = vunpack.c.l.b16 %v36
  %v75 = vunpack.c.l.b16 %v37
  %v76 = vunpack.c.l.b16 %v38
  %v77 = vunpack.c.l.b16 %v39
  %v78 = vunpack.c.l.b16 %v40
  %v79 = vunpack.c.l.b16 %v41
  %v80 = vunpack.c.l.b16 %v42
  %v81 = vunpack.c.l.b16 %v43
  %v82 = vunpack.c.l.b16 %v44
  %v83 = vunpack.c.l.b16 %v45
  %v84 = vunpack.c.l.b16 %v46
  %v85 = vunpack.c.l.b16 %v47
  %v86 = vunpack.c.l.b16 %v48
  %v87 = vunpack.c.l.b16 %v49
  %v88 = vpack.c.b16 %v73, %v72
  %v89 = vpack.c.b16 %v75, %v74
  %v90 = vpack.c.b16 %v77, %v76
  %v91 = vpack.c.b16 %v79, %v78
  %v92 = vpack.c.b16 %v81, %v80
  %v93 = vpack.c.b16 %v83, %v82
  %v94 = vpack.c.b16 %v85, %v84
  %v95 = vpack.c.b16 %v87, %v86
  %104 = vmatprep.subr.bf16.mxu0 0
  %105 = vmatpush1.bf16.msra.mxu0 %v88
  %106 = vmatprep.subr.bf16.mxu0 0
  %107 = vmatpush1.bf16.msra.mxu0 %v89
  %108 = vmatprep.subr.bf16.mxu0 0
  %109 = vmatpush1.bf16.msra.mxu0 %v90
  %110 = vmatprep.subr.bf16.mxu0 0
  %111 = vmatpush1.bf16.msra.mxu0 %v91
  %112 = vmatprep.subr.bf16.mxu0 0
  %113 = vmatpush1.bf16.msra.mxu0 %v92
  %114 = vmatprep.subr.bf16.mxu0 0
  %115 = vmatpush1.bf16.msra.mxu0 %v93
  %116 = vmatprep.subr.bf16.mxu0 0
  %117 = vmatpush1.bf16.msra.mxu0 %v94
  %118 = vmatprep.subr.bf16.mxu0 0
  %119 = vmatpush1.bf16.msra.mxu0 %v95
  %120 = vmatprep.subr.bf16.mxu0 0
  %121 = vmatpush1.bf16.msra.mxu0 0
  %122 = vmatprep.subr.bf16.mxu0 0
  %123 = vmatpush1.bf16.msra.mxu0 0
  %124 = vmatprep.subr.bf16.mxu0 0
  %125 = vmatpush1.bf16.msra.mxu0 0
  %126 = vmatprep.subr.bf16.mxu0 0
  %127 = vmatpush1.bf16.msra.mxu0 0
  %128 = vmatprep.subr.bf16.mxu0 0
  %129 = vmatpush1.bf16.msra.mxu0 0
  %130 = vmatprep.subr.bf16.mxu0 0
  %131 = vmatpush1.bf16.msra.mxu0 0
  %132 = vmatprep.subr.bf16.mxu0 0
  %133 = vmatpush1.bf16.msra.mxu0 0
  %134 = vmatprep.subr.bf16.mxu0 0
  %135 = vmatpush1.bf16.msra.mxu0 0
  %136 = vmatprep.mubr.bf16.mxu0 0
  %137 = vmatmul.mubr.bf16.gmra.mrb[0].mxu0 %v54
  %v138 = vpop.f32.mrb[0].mxu0
  %v139 = vadd.f32 0.0, %v138
  %v140 = vpop.f32.mrb[0].mxu0
  %v141 = vpop.f32.mrb[0].mxu0
  %v142 = vadd.f32 0.0, %v141
  %v143 = vpop.f32.mrb[0].mxu0
  %144 = vdwg.mxu0
  %v145 = vadd.f32 %v30, %v139
  %v146 = vadd.f32 %v31, %v142
  %147 = vst [vmem:[#allocation2] sm:$0xff] %v145
  %148 = vst [vmem:[#allocation2 + $0x8] sm:$0xff] %v146
  // Predicated region
  $region30: #{bert_forward.16} parent=0 // pred_check
    %p149 = pneg %p24
  $region31: #{bert_forward.16} parent=0 // pred_check_branch
    %151 = sbr.rel (%p149) target = $region33
  $region32: #{bert_forward.16} parent=0 // pred_region
    %v152 = vld [vmem:[#allocation2] sm:$0xff]
    %v153 = vld [vmem:[#allocation2 + $0x8] sm:$0xff]
    %v154 = vld [vmem:[%s2] sm:$0x1]
    %v156 = vlaneseq
    %v157 = vshrl.u32 %v156, 7
    %v158 = vsub.s32 0, %v157
    %v159 = vrot.slane %v154, %v158
    %v161 = vadd.f32 %v152, %v159
    %v162 = vadd.f32 %v153, %v159
    %v163 = vld [vmem:[%s3] sm:$0xf]
    %v164 = vld [vmem:[%s3 + $0x4] sm:$0xf]
    %v165 = vunpack.c.l.bf16 %v163
    %v166 = vunpack.c.l.bf16 %v164
    %v167 = vadd.f32 %v161, %v165
    %v168 = vadd.f32 %v162, %v166
    %169 = vadd.xlane.f32.xlu0 %v167
    %v170 = vpop.xlane.xlu0 %169
    %171 = vadd.xlane.f32.xlu0 %v168
    %v172 = vpop.xlane.xlu0 %171
    %v173 = vmul.f32 %v170, 0.03125
    %v174 = vmul.f32 %v172, 0.03125
    %v175 = vmul.f32 %v167, %v167
    %v176 = vmul.f32 %v168, %v168
    %177 = vadd.xlane.f32.xlu0 %v175
    %v178 = vpop.xlane.xlu0 %177
    %179 = vadd.xlane.f32.xlu0 %v176
    %v180 = vpop.xlane.xlu0 %179
    %v181 = vmul.f32 %v178, 0.03125
    %v182 = vmul.f32 %v180, 0.03125
    %v183 = vmul.f32 %v173, %v173
    %v184 = vmul.f32 %v174, %v174
    %v185 = vsub.f32 %v181, %v183
    %v186 = vsub.f32 %v182, %v184
    %v187 = vsub.f32 %v167, %v173
    %v188 = vsub.f32 %v168, %v174
    %v189 = vadd.f32 %v185, 1e-05
    %v190 = vadd.f32 %v186, 1e-05
    %v191 = vrsqrt.pop %v189
    %v192 = vrsqrt.pop %v190
    %v193 = vmul.f32 %v187, %v191
    %v194 = vmul.f32 %v188, %v192
    %v195 = vld [vmem:[%s4] sm:$0x1]
    %v197 = vlaneseq
    %v198 = vshrl.u32 %v197, 7
    %v199 = vsub.s32 0, %v198
    %v200 = vrot.slane %v195, %v199
    %v202 = vmul.f32 %v193, %v200
    %v203 = vmul.f32 %v194, %v200
    %v204 = vld [vmem:[%s5] sm:$0x1]
    %v206 = vlaneseq
    %v207 = vshrl.u32 %v206, 7
    %v208 = vsub.s32 0, %v207
    %v209 = vrot.slane %v204, %v208
    %v211 = vadd.f32 %v202, %v209
    %v212 = vadd.f32 %v203, %v209
    %v213 = vpack.c.bf16 %v212, %v211
    %v215 = vunpack.c.l.b16 %v213
    %v216 = vunpack.c.h.b16 %v213
    %v217 = vpack.c.b16 %v215, %v215
    %v218 = vpack.c.b16 %v216, %v216
    %221 = vst [vmem:[%s6] sm:$0xf] %v217
    %222 = vst [vmem:[%s6 + $0x4] sm:$0xf] %v218
  $region33: #{bert_forward.16} parent=0 // pred_fallthru
    _
  // Predicated region
  $region34: #{bert_forward.16} parent=0 // pred_check
    _
  $region35: #{bert_forward.16} parent=0 // pred_check_branch
    %224 = sbr.rel (0) target = $region37
  $region36: #{bert_forward.16} parent=0 // pred_region
    _
  $region37: #{bert_forward.16} parent=0 // pred_fallthru
    _
  // Predicated region
  $region38: #{bert_forward.16} parent=0 // pred_check
    _
  $region39: #{bert_forward.16} parent=0 // pred_check_branch
    %226 = sbr.rel (0) target = $region41
  $region40: #{bert_forward.16} parent=0 // pred_region
    _
  $region41: #{bert_forward.16} parent=0 // pred_fallthru
    _

// kernel: bert_forward.24
$region0: #{bert_forward.24}
  #allocation0 [shape = 'u32[]', space=smem, size = 0x4, offset = 0x4, fixed_abs, tag = 'smem constant byte address 0x4 - core index']
  #allocation1 [shape = 'u32[144,128]{1,0:T(1,128)}', space=vmem, size = 0x12000, scoped, tag = 'internal scratch']
  #allocation2 [shape = 'f32[8,128]{1,0:T(8,128)}', space=vmem, size = 0x1000, scoped, tag = 'scratch operand']
  %s0 = inlined_call_operand.vmem [shape: bf16[8,128], index: 0, kind: input, shape index: {}]
  %s1 = inlined_call_operand.vmem [shape: bf16[128,128], index: 1, kind: input, shape index: {}]
  %s2 = inlined_call_operand.vmem [shape: f32[1,128], index: 2, kind: input, shape index: {}]
  %s3 = inlined_call_operand.vmem [shape: f32[1,128], index: 3, kind: input, shape index: {}]
  %s4 = inlined_call_operand.vmem [shape: f32[1,128], index: 4, kind: input, shape index: {}]
  %s5 = inlined_call_operand.vmem [shape: bf16[8,128], index: 5, kind: output, shape index: {}]
  %s6 = sld [smem:[#allocation0]]
  $region38: #{bert_forward.24} parent=0
    _
  %s8 = ssub.s32 1, %s6
  %s9 = scalar_select 0, %s8, %s6
  // Predicated region
  $region2: #{bert_forward.24} parent=0 // pred_check
    _
  $region3: #{bert_forward.24} parent=0 // pred_check_branch
    %11 = sbr.rel (0) target = $region5
  $region4: #{bert_forward.24} parent=0 // pred_region
    _
  $region5: #{bert_forward.24} parent=0 // pred_fallthru
    _
  // Predicated region
  $region6: #{bert_forward.24} parent=0 // pred_check
    _
  $region7: #{bert_forward.24} parent=0 // pred_check_branch
    %13 = sbr.rel (0) target = $region9
  $region8: #{bert_forward.24} parent=0 // pred_region
    _
  $region9: #{bert_forward.24} parent=0 // pred_fallthru
    _
  // Predicated region
  $region10: #{bert_forward.24} parent=0 // pred_check
    _
  $region11: #{bert_forward.24} parent=0 // pred_check_branch
    %15 = sbr.rel (0) target = $region13
  $region12: #{bert_forward.24} parent=0 // pred_region
    _
  $region13: #{bert_forward.24} parent=0 // pred_fallthru
    _
  // Predicated region
  $region14: #{bert_forward.24} parent=0 // pred_check
    _
  $region15: #{bert_forward.24} parent=0 // pred_check_branch
    %17 = sbr.rel (0) target = $region17
  $region16: #{bert_forward.24} parent=0 // pred_region
    _
  $region17: #{bert_forward.24} parent=0 // pred_fallthru
    _
  // Predicated region
  $region18: #{bert_forward.24} parent=0 // pred_check
    _
  $region19: #{bert_forward.24} parent=0 // pred_check_branch
    %19 = sbr.rel (0) target = $region21
  $region20: #{bert_forward.24} parent=0 // pred_region
    _
  $region21: #{bert_forward.24} parent=0 // pred_fallthru
    _
  %p21 = scmp.eq.s32.totalorder 0, 0
  // Predicated region
  $region22: #{bert_forward.24} parent=0 // pred_check
    %p22 = pneg %p21
  $region23: #{bert_forward.24} parent=0 // pred_check_branch
    %24 = sbr.rel (%p22) target = $region25
  $region24: #{bert_forward.24} parent=0 // pred_region
    %25 = vst [vmem:[#allocation2] sm:$0xff] 0.0
  $region25: #{bert_forward.24} parent=0 // pred_fallthru
    _
  %v26 = vld [vmem:[#allocation2] sm:$0xff]
  %v27 = vld [vmem:[%s0] sm:$0xf]
  %v28 = vld [vmem:[%s1] sm:$0xf]
  %v29 = vld [vmem:[%s1 + $0x4] sm:$0xf]
  %v30 = vld [vmem:[%s1 + $0x8] sm:$0xf]
  %v31 = vld [vmem:[%s1 + $0xc] sm:$0xf]
  %v32 = vld [vmem:[%s1 + $0x10] sm:$0xf]
  %v33 = vld [vmem:[%s1 + $0x14] sm:$0xf]
  %v34 = vld [vmem:[%s1 + $0x18] sm:$0xf]
  %v35 = vld [vmem:[%s1 + $0x1c] sm:$0xf]
  %v36 = vld [vmem:[%s1 + $0x20] sm:$0xf]
  %v37 = vld [vmem:[%s1 + $0x24] sm:$0xf]
  %v38 = vld [vmem:[%s1 + $0x28] sm:$0xf]
  %v39 = vld [vmem:[%s1 + $0x2c] sm:$0xf]
  %v40 = vld [vmem:[%s1 + $0x30] sm:$0xf]
  %v41 = vld [vmem:[%s1 + $0x34] sm:$0xf]
  %v42 = vld [vmem:[%s1 + $0x38] sm:$0xf]
  %v43 = vld [vmem:[%s1 + $0x3c] sm:$0xf]
  %v60 = vunpack.c.l.b16 %v28
  %v61 = vunpack.c.l.b16 %v29
  %v62 = vunpack.c.l.b16 %v30
  %v63 = vunpack.c.l.b16 %v31
  %v64 = vunpack.c.l.b16 %v32
  %v65 = vunpack.c.l.b16 %v33
  %v66 = vunpack.c.l.b16 %v34
  %v67 = vunpack.c.l.b16 %v35
  %v68 = vunpack.c.l.b16 %v36
  %v69 = vunpack.c.l.b16 %v37
  %v70 = vunpack.c.l.b16 %v38
  %v71 = vunpack.c.l.b16 %v39
  %v72 = vunpack.c.l.b16 %v40
  %v73 = vunpack.c.l.b16 %v41
  %v74 = vunpack.c.l.b16 %v42
  %v75 = vunpack.c.l.b16 %v43
  %v76 = vpack.c.b16 %v61, %v60
  %v77 = vpack.c.b16 %v63, %v62
  %v78 = vpack.c.b16 %v65, %v64
  %v79 = vpack.c.b16 %v67, %v66
  %v80 = vpack.c.b16 %v69, %v68
  %v81 = vpack.c.b16 %v71, %v70
  %v82 = vpack.c.b16 %v73, %v72
  %v83 = vpack.c.b16 %v75, %v74
  %92 = vmatprep.subr.bf16.mxu0 0
  %93 = vmatpush1.bf16.msra.mxu0 %v76
  %94 = vmatprep.subr.bf16.mxu0 0
  %95 = vmatpush1.bf16.msra.mxu0 %v77
  %96 = vmatprep.subr.bf16.mxu0 0
  %97 = vmatpush1.bf16.msra.mxu0 %v78
  %98 = vmatprep.subr.bf16.mxu0 0
  %99 = vmatpush1.bf16.msra.mxu0 %v79
  %100 = vmatprep.subr.bf16.mxu0 0
  %101 = vmatpush1.bf16.msra.mxu0 %v80
  %102 = vmatprep.subr.bf16.mxu0 0
  %103 = vmatpush1.bf16.msra.mxu0 %v81
  %104 = vmatprep.subr.bf16.mxu0 0
  %105 = vmatpush1.bf16.msra.mxu0 %v82
  %106 = vmatprep.subr.bf16.mxu0 0
  %107 = vmatpush1.bf16.msra.mxu0 %v83
  %108 = vmatprep.subr.bf16.mxu0 0
  %109 = vmatpush1.bf16.msra.mxu0 0
  %110 = vmatprep.subr.bf16.mxu0 0
  %111 = vmatpush1.bf16.msra.mxu0 0
  %112 = vmatprep.subr.bf16.mxu0 0
  %113 = vmatpush1.bf16.msra.mxu0 0
  %114 = vmatprep.subr.bf16.mxu0 0
  %115 = vmatpush1.bf16.msra.mxu0 0
  %116 = vmatprep.subr.bf16.mxu0 0
  %117 = vmatpush1.bf16.msra.mxu0 0
  %118 = vmatprep.subr.bf16.mxu0 0
  %119 = vmatpush1.bf16.msra.mxu0 0
  %120 = vmatprep.subr.bf16.mxu0 0
  %121 = vmatpush1.bf16.msra.mxu0 0
  %122 = vmatprep.subr.bf16.mxu0 0
  %123 = vmatpush1.bf16.msra.mxu0 0
  %124 = vmatprep.mubr.bf16.mxu0 0
  %125 = vmatmul.mubr.bf16.gmra.mrb[0].mxu0 %v27
  %v126 = vpop.f32.mrb[0].mxu0
  %v127 = vadd.f32 0.0, %v126
  %v128 = vpop.f32.mrb[0].mxu0
  %v129 = vpop.f32.mrb[0].mxu0
  %v130 = vpop.f32.mrb[0].mxu0
  %131 = vdwg.mxu0
  %v132 = vadd.f32 %v26, %v127
  %133 = vst [vmem:[#allocation2] sm:$0xff] %v132
  // Predicated region
  $region26: #{bert_forward.24} parent=0 // pred_check
    %p134 = pneg %p21
  $region27: #{bert_forward.24} parent=0 // pred_check_branch
    %136 = sbr.rel (%p134) target = $region29
  $region28: #{bert_forward.24} parent=0 // pred_region
    %v137 = vld [vmem:[#allocation2] sm:$0xff]
    %v138 = vld [vmem:[%s2] sm:$0x1]
    %v140 = vlaneseq
    %v141 = vshrl.u32 %v140, 7
    %v142 = vsub.s32 0, %v141
    %v143 = vrot.slane %v138, %v142
    %v145 = vadd.f32 %v137, %v143
    %v146 = vmax.f32 %v145, 0.0
    %147 = vadd.xlane.f32.xlu0 %v146
    %v148 = vpop.xlane.xlu0 %147
    %v149 = vmul.f32 %v148, 0.03125
    %v150 = vmul.f32 %v146, %v146
    %151 = vadd.xlane.f32.xlu0 %v150
    %v152 = vpop.xlane.xlu0 %151
    %v153 = vmul.f32 %v152, 0.03125
    %v154 = vmul.f32 %v149, %v149
    %v155 = vsub.f32 %v153, %v154
    %v156 = vsub.f32 %v146, %v149
    %v157 = vadd.f32 %v155, 1e-05
    %v158 = vrsqrt.pop %v157
    %v159 = vmul.f32 %v156, %v158
    %v160 = vld [vmem:[%s3] sm:$0x1]
    %v162 = vlaneseq
    %v163 = vshrl.u32 %v162, 7
    %v164 = vsub.s32 0, %v163
    %v165 = vrot.slane %v160, %v164
    %v167 = vmul.f32 %v159, %v165
    %v168 = vld [vmem:[%s4] sm:$0x1]
    %v170 = vlaneseq
    %v171 = vshrl.u32 %v170, 7
    %v172 = vsub.s32 0, %v171
    %v173 = vrot.slane %v168, %v172
    %v175 = vadd.f32 %v167, %v173
    %v176 = vpack.c.bf16 %v175, %v175
    %177 = vst [vmem:[%s5] sm:$0xf] %v176
  $region29: #{bert_forward.24} parent=0 // pred_fallthru
    _
  // Predicated region
  $region30: #{bert_forward.24} parent=0 // pred_check
    _
  $region31: #{bert_forward.24} parent=0 // pred_check_branch
    %179 = sbr.rel (0) target = $region33
  $region32: #{bert_forward.24} parent=0 // pred_region
    _
  $region33: #{bert_forward.24} parent=0 // pred_fallthru
    _
  // Predicated region
  $region34: #{bert_forward.24} parent=0 // pred_check
    _
  $region35: #{bert_forward.24} parent=0 // pred_check_branch
    %181 = sbr.rel (0) target = $region37
  $region36: #{bert_forward.24} parent=0 // pred_region
    _
  $region37: #{bert_forward.24} parent=0 // pred_fallthru
    _

// kernel: bert_forward.25
$region0: #{bert_forward.25}
  #allocation0 [shape = 'u32[]', space=smem, size = 0x4, offset = 0x4, fixed_abs, tag = 'smem constant byte address 0x4 - core index']
  #allocation1 [shape = 'u32[144,128]{1,0:T(1,128)}', space=vmem, size = 0x12000, scoped, tag = 'internal scratch']
  #allocation2 [shape = 'f32[8,128]{1,0:T(8,128)}', space=vmem, size = 0x1000, scoped, tag = 'scratch operand']
  %s0 = inlined_call_operand.vmem [shape: bf16[8,128], index: 0, kind: input, shape index: {}]
  %s1 = inlined_call_operand.vmem [shape: bf16[128,128], index: 1, kind: input, shape index: {}]
  %s2 = inlined_call_operand.vmem [shape: f32[1,128], index: 2, kind: input, shape index: {}]
  %s3 = inlined_call_operand.vmem [shape: f32[8,128], index: 3, kind: output, shape index: {}]
  %s4 = sld [smem:[#allocation0]]
  $region30: #{bert_forward.25} parent=0
    _
  %s6 = ssub.s32 1, %s4
  %s7 = scalar_select 0, %s6, %s4
  // Predicated region
  $region2: #{bert_forward.25} parent=0 // pred_check
    _
  $region3: #{bert_forward.25} parent=0 // pred_check_branch
    %9 = sbr.rel (0) target = $region5
  $region4: #{bert_forward.25} parent=0 // pred_region
    _
  $region5: #{bert_forward.25} parent=0 // pred_fallthru
    _
  // Predicated region
  $region6: #{bert_forward.25} parent=0 // pred_check
    _
  $region7: #{bert_forward.25} parent=0 // pred_check_branch
    %11 = sbr.rel (0) target = $region9
  $region8: #{bert_forward.25} parent=0 // pred_region
    _
  $region9: #{bert_forward.25} parent=0 // pred_fallthru
    _
  // Predicated region
  $region10: #{bert_forward.25} parent=0 // pred_check
    _
  $region11: #{bert_forward.25} parent=0 // pred_check_branch
    %13 = sbr.rel (0) target = $region13
  $region12: #{bert_forward.25} parent=0 // pred_region
    _
  $region13: #{bert_forward.25} parent=0 // pred_fallthru
    _
  %p15 = scmp.eq.s32.totalorder 0, 0
  // Predicated region
  $region14: #{bert_forward.25} parent=0 // pred_check
    %p16 = pneg %p15
  $region15: #{bert_forward.25} parent=0 // pred_check_branch
    %18 = sbr.rel (%p16) target = $region17
  $region16: #{bert_forward.25} parent=0 // pred_region
    %19 = vst [vmem:[#allocation2] sm:$0xff] 0.0
  $region17: #{bert_forward.25} parent=0 // pred_fallthru
    _
  %v20 = vld [vmem:[#allocation2] sm:$0xff]
  %v21 = vld [vmem:[%s0] sm:$0xf]
  %v22 = vld [vmem:[%s1] sm:$0xf]
  %v23 = vld [vmem:[%s1 + $0x4] sm:$0xf]
  %v24 = vld [vmem:[%s1 + $0x8] sm:$0xf]
  %v25 = vld [vmem:[%s1 + $0xc] sm:$0xf]
  %v26 = vld [vmem:[%s1 + $0x10] sm:$0xf]
  %v27 = vld [vmem:[%s1 + $0x14] sm:$0xf]
  %v28 = vld [vmem:[%s1 + $0x18] sm:$0xf]
  %v29 = vld [vmem:[%s1 + $0x1c] sm:$0xf]
  %v30 = vld [vmem:[%s1 + $0x20] sm:$0xf]
  %v31 = vld [vmem:[%s1 + $0x24] sm:$0xf]
  %v32 = vld [vmem:[%s1 + $0x28] sm:$0xf]
  %v33 = vld [vmem:[%s1 + $0x2c] sm:$0xf]
  %v34 = vld [vmem:[%s1 + $0x30] sm:$0xf]
  %v35 = vld [vmem:[%s1 + $0x34] sm:$0xf]
  %v36 = vld [vmem:[%s1 + $0x38] sm:$0xf]
  %v37 = vld [vmem:[%s1 + $0x3c] sm:$0xf]
  %v54 = vunpack.c.l.b16 %v22
  %v55 = vunpack.c.l.b16 %v23
  %v56 = vunpack.c.l.b16 %v24
  %v57 = vunpack.c.l.b16 %v25
  %v58 = vunpack.c.l.b16 %v26
  %v59 = vunpack.c.l.b16 %v27
  %v60 = vunpack.c.l.b16 %v28
  %v61 = vunpack.c.l.b16 %v29
  %v62 = vunpack.c.l.b16 %v30
  %v63 = vunpack.c.l.b16 %v31
  %v64 = vunpack.c.l.b16 %v32
  %v65 = vunpack.c.l.b16 %v33
  %v66 = vunpack.c.l.b16 %v34
  %v67 = vunpack.c.l.b16 %v35
  %v68 = vunpack.c.l.b16 %v36
  %v69 = vunpack.c.l.b16 %v37
  %v70 = vpack.c.b16 %v55, %v54
  %v71 = vpack.c.b16 %v57, %v56
  %v72 = vpack.c.b16 %v59, %v58
  %v73 = vpack.c.b16 %v61, %v60
  %v74 = vpack.c.b16 %v63, %v62
  %v75 = vpack.c.b16 %v65, %v64
  %v76 = vpack.c.b16 %v67, %v66
  %v77 = vpack.c.b16 %v69, %v68
  %86 = vmatprep.subr.bf16.mxu0 0
  %87 = vmatpush1.bf16.msra.mxu0 %v70
  %88 = vmatprep.subr.bf16.mxu0 0
  %89 = vmatpush1.bf16.msra.mxu0 %v71
  %90 = vmatprep.subr.bf16.mxu0 0
  %91 = vmatpush1.bf16.msra.mxu0 %v72
  %92 = vmatprep.subr.bf16.mxu0 0
  %93 = vmatpush1.bf16.msra.mxu0 %v73
  %94 = vmatprep.subr.bf16.mxu0 0
  %95 = vmatpush1.bf16.msra.mxu0 %v74
  %96 = vmatprep.subr.bf16.mxu0 0
  %97 = vmatpush1.bf16.msra.mxu0 %v75
  %98 = vmatprep.subr.bf16.mxu0 0
  %99 = vmatpush1.bf16.msra.mxu0 %v76
  %100 = vmatprep.subr.bf16.mxu0 0
  %101 = vmatpush1.bf16.msra.mxu0 %v77
  %102 = vmatprep.subr.bf16.mxu0 0
  %103 = vmatpush1.bf16.msra.mxu0 0
  %104 = vmatprep.subr.bf16.mxu0 0
  %105 = vmatpush1.bf16.msra.mxu0 0
  %106 = vmatprep.subr.bf16.mxu0 0
  %107 = vmatpush1.bf16.msra.mxu0 0
  %108 = vmatprep.subr.bf16.mxu0 0
  %109 = vmatpush1.bf16.msra.mxu0 0
  %110 = vmatprep.subr.bf16.mxu0 0
  %111 = vmatpush1.bf16.msra.mxu0 0
  %112 = vmatprep.subr.bf16.mxu0 0
  %113 = vmatpush1.bf16.msra.mxu0 0
  %114 = vmatprep.subr.bf16.mxu0 0
  %115 = vmatpush1.bf16.msra.mxu0 0
  %116 = vmatprep.subr.bf16.mxu0 0
  %117 = vmatpush1.bf16.msra.mxu0 0
  %118 = vmatprep.mubr.bf16.mxu0 0
  %119 = vmatmul.mubr.bf16.gmra.mrb[0].mxu0 %v21
  %v120 = vpop.f32.mrb[0].mxu0
  %v121 = vadd.f32 0.0, %v120
  %v122 = vpop.f32.mrb[0].mxu0
  %v123 = vpop.f32.mrb[0].mxu0
  %v124 = vpop.f32.mrb[0].mxu0
  %125 = vdwg.mxu0
  %v126 = vadd.f32 %v20, %v121
  %127 = vst [vmem:[#allocation2] sm:$0xff] %v126
  // Predicated region
  $region18: #{bert_forward.25} parent=0 // pred_check
    %p128 = pneg %p15
  $region19: #{bert_forward.25} parent=0 // pred_check_branch
    %130 = sbr.rel (%p128) target = $region21
  $region20: #{bert_forward.25} parent=0 // pred_region
    %v131 = vld [vmem:[#allocation2] sm:$0xff]
    %v132 = vld [vmem:[%s2] sm:$0x1]
    %v134 = vlaneseq
    %v135 = vshrl.u32 %v134, 7
    %v136 = vsub.s32 0, %v135
    %v137 = vrot.slane %v132, %v136
    %v139 = vadd.f32 %v131, %v137
    %140 = vst [vmem:[%s3] sm:$0xff] %v139
  $region21: #{bert_forward.25} parent=0 // pred_fallthru
    _
  // Predicated region
  $region22: #{bert_forward.25} parent=0 // pred_check
    _
  $region23: #{bert_forward.25} parent=0 // pred_check_branch
    %142 = sbr.rel (0) target = $region25
  $region24: #{bert_forward.25} parent=0 // pred_region
    _
  $region25: #{bert_forward.25} parent=0 // pred_fallthru
    _
  // Predicated region
  $region26: #{bert_forward.25} parent=0 // pred_check
    _
  $region27: #{bert_forward.25} parent=0 // pred_check_branch
    %144 = sbr.rel (0) target = $region29
  $region28: #{bert_forward.25} parent=0 // pred_region
    _
  $region29: #{bert_forward.25} parent=0 // pred_fallthru
    _

// kernel: bert_forward.27
$region0: #{bert_forward.27}
  #allocation0 [shape = 'u32[]', space=smem, size = 0x4, offset = 0x4, fixed_abs, tag = 'smem constant byte address 0x4 - core index']
  #allocation1 [shape = 'u32[144,128]{1,0:T(1,128)}', space=vmem, size = 0x12000, scoped, tag = 'internal scratch']
  #allocation2 [shape = 'f32[8,128]{1,0:T(8,128)}', space=vmem, size = 0x1000, scoped, tag = 'scratch operand']
  %s0 = inlined_call_operand.vmem [shape: bf16[8,128], index: 0, kind: input, shape index: {}]
  %s1 = inlined_call_operand.vmem [shape: bf16[128,128], index: 1, kind: input, shape index: {}]
  %s2 = inlined_call_operand.vmem [shape: f32[1,128], index: 2, kind: input, shape index: {}]
  %s3 = inlined_call_operand.vmem [shape: f32[8,128], index: 3, kind: output, shape index: {}]
  %s4 = sld [smem:[#allocation0]]
  $region30: #{bert_forward.27} parent=0
    _
  %s6 = ssub.s32 1, %s4
  %s7 = scalar_select 0, %s6, %s4
  // Predicated region
  $region2: #{bert_forward.27} parent=0 // pred_check
    _
  $region3: #{bert_forward.27} parent=0 // pred_check_branch
    %9 = sbr.rel (0) target = $region5
  $region4: #{bert_forward.27} parent=0 // pred_region
    _
  $region5: #{bert_forward.27} parent=0 // pred_fallthru
    _
  // Predicated region
  $region6: #{bert_forward.27} parent=0 // pred_check
    _
  $region7: #{bert_forward.27} parent=0 // pred_check_branch
    %11 = sbr.rel (0) target = $region9
  $region8: #{bert_forward.27} parent=0 // pred_region
    _
  $region9: #{bert_forward.27} parent=0 // pred_fallthru
    _
  // Predicated region
  $region10: #{bert_forward.27} parent=0 // pred_check
    _
  $region11: #{bert_forward.27} parent=0 // pred_check_branch
    %13 = sbr.rel (0) target = $region13
  $region12: #{bert_forward.27} parent=0 // pred_region
    _
  $region13: #{bert_forward.27} parent=0 // pred_fallthru
    _
  %p15 = scmp.eq.s32.totalorder 0, 0
  // Predicated region
  $region14: #{bert_forward.27} parent=0 // pred_check
    %p16 = pneg %p15
  $region15: #{bert_forward.27} parent=0 // pred_check_branch
    %18 = sbr.rel (%p16) target = $region17
  $region16: #{bert_forward.27} parent=0 // pred_region
    %19 = vst [vmem:[#allocation2] sm:$0xff] 0.0
  $region17: #{bert_forward.27} parent=0 // pred_fallthru
    _
  %v20 = vld [vmem:[#allocation2] sm:$0xff]
  %v21 = vld [vmem:[%s0] sm:$0xf]
  %v22 = vld [vmem:[%s1] sm:$0xf]
  %v23 = vld [vmem:[%s1 + $0x4] sm:$0xf]
  %v24 = vld [vmem:[%s1 + $0x8] sm:$0xf]
  %v25 = vld [vmem:[%s1 + $0xc] sm:$0xf]
  %v26 = vld [vmem:[%s1 + $0x10] sm:$0xf]
  %v27 = vld [vmem:[%s1 + $0x14] sm:$0xf]
  %v28 = vld [vmem:[%s1 + $0x18] sm:$0xf]
  %v29 = vld [vmem:[%s1 + $0x1c] sm:$0xf]
  %v30 = vld [vmem:[%s1 + $0x20] sm:$0xf]
  %v31 = vld [vmem:[%s1 + $0x24] sm:$0xf]
  %v32 = vld [vmem:[%s1 + $0x28] sm:$0xf]
  %v33 = vld [vmem:[%s1 + $0x2c] sm:$0xf]
  %v34 = vld [vmem:[%s1 + $0x30] sm:$0xf]
  %v35 = vld [vmem:[%s1 + $0x34] sm:$0xf]
  %v36 = vld [vmem:[%s1 + $0x38] sm:$0xf]
  %v37 = vld [vmem:[%s1 + $0x3c] sm:$0xf]
  %v54 = vunpack.c.l.b16 %v22
  %v55 = vunpack.c.l.b16 %v23
  %v56 = vunpack.c.l.b16 %v24
  %v57 = vunpack.c.l.b16 %v25
  %v58 = vunpack.c.l.b16 %v26
  %v59 = vunpack.c.l.b16 %v27
  %v60 = vunpack.c.l.b16 %v28
  %v61 = vunpack.c.l.b16 %v29
  %v62 = vunpack.c.l.b16 %v30
  %v63 = vunpack.c.l.b16 %v31
  %v64 = vunpack.c.l.b16 %v32
  %v65 = vunpack.c.l.b16 %v33
  %v66 = vunpack.c.l.b16 %v34
  %v67 = vunpack.c.l.b16 %v35
  %v68 = vunpack.c.l.b16 %v36
  %v69 = vunpack.c.l.b16 %v37
  %v70 = vpack.c.b16 %v55, %v54
  %v71 = vpack.c.b16 %v57, %v56
  %v72 = vpack.c.b16 %v59, %v58
  %v73 = vpack.c.b16 %v61, %v60
  %v74 = vpack.c.b16 %v63, %v62
  %v75 = vpack.c.b16 %v65, %v64
  %v76 = vpack.c.b16 %v67, %v66
  %v77 = vpack.c.b16 %v69, %v68
  %86 = vmatprep.subr.bf16.mxu0 0
  %87 = vmatpush1.bf16.msra.mxu0 %v70
  %88 = vmatprep.subr.bf16.mxu0 0
  %89 = vmatpush1.bf16.msra.mxu0 %v71
  %90 = vmatprep.subr.bf16.mxu0 0
  %91 = vmatpush1.bf16.msra.mxu0 %v72
  %92 = vmatprep.subr.bf16.mxu0 0
  %93 = vmatpush1.bf16.msra.mxu0 %v73
  %94 = vmatprep.subr.bf16.mxu0 0
  %95 = vmatpush1.bf16.msra.mxu0 %v74
  %96 = vmatprep.subr.bf16.mxu0 0
  %97 = vmatpush1.bf16.msra.mxu0 %v75
  %98 = vmatprep.subr.bf16.mxu0 0
  %99 = vmatpush1.bf16.msra.mxu0 %v76
  %100 = vmatprep.subr.bf16.mxu0 0
  %101 = vmatpush1.bf16.msra.mxu0 %v77
  %102 = vmatprep.subr.bf16.mxu0 0
  %103 = vmatpush1.bf16.msra.mxu0 0
  %104 = vmatprep.subr.bf16.mxu0 0
  %105 = vmatpush1.bf16.msra.mxu0 0
  %106 = vmatprep.subr.bf16.mxu0 0
  %107 = vmatpush1.bf16.msra.mxu0 0
  %108 = vmatprep.subr.bf16.mxu0 0
  %109 = vmatpush1.bf16.msra.mxu0 0
  %110 = vmatprep.subr.bf16.mxu0 0
  %111 = vmatpush1.bf16.msra.mxu0 0
  %112 = vmatprep.subr.bf16.mxu0 0
  %113 = vmatpush1.bf16.msra.mxu0 0
  %114 = vmatprep.subr.bf16.mxu0 0
  %115 = vmatpush1.bf16.msra.mxu0 0
  %116 = vmatprep.subr.bf16.mxu0 0
  %117 = vmatpush1.bf16.msra.mxu0 0
  %118 = vmatprep.mubr.bf16.mxu0 0
  %119 = vmatmul.mubr.bf16.gmra.mrb[0].mxu0 %v21
  %v120 = vpop.f32.mrb[0].mxu0
  %v121 = vadd.f32 0.0, %v120
  %v122 = vpop.f32.mrb[0].mxu0
  %v123 = vpop.f32.mrb[0].mxu0
  %v124 = vpop.f32.mrb[0].mxu0
  %125 = vdwg.mxu0
  %v126 = vadd.f32 %v20, %v121
  %127 = vst [vmem:[#allocation2] sm:$0xff] %v126
  // Predicated region
  $region18: #{bert_forward.27} parent=0 // pred_check
    %p128 = pneg %p15
  $region19: #{bert_forward.27} parent=0 // pred_check_branch
    %130 = sbr.rel (%p128) target = $region21
  $region20: #{bert_forward.27} parent=0 // pred_region
    %v131 = vld [vmem:[#allocation2] sm:$0xff]
    %v132 = vld [vmem:[%s2] sm:$0x1]
    %v134 = vlaneseq
    %v135 = vshrl.u32 %v134, 7
    %v136 = vsub.s32 0, %v135
    %v137 = vrot.slane %v132, %v136
    %v139 = vadd.f32 %v131, %v137
    %140 = vst [vmem:[%s3] sm:$0xff] %v139
  $region21: #{bert_forward.27} parent=0 // pred_fallthru
    _
  // Predicated region
  $region22: #{bert_forward.27} parent=0 // pred_check
    _
  $region23: #{bert_forward.27} parent=0 // pred_check_branch
    %142 = sbr.rel (0) target = $region25
  $region24: #{bert_forward.27} parent=0 // pred_region
    _
  $region25: #{bert_forward.27} parent=0 // pred_fallthru
    _
  // Predicated region
  $region26: #{bert_forward.27} parent=0 // pred_check
    _
  $region27: #{bert_forward.27} parent=0 // pred_check_branch
    %144 = sbr.rel (0) target = $region29
  $region28: #{bert_forward.27} parent=0 // pred_region
    _
  $region29: #{bert_forward.27} parent=0 // pred_fallthru
    _

// kernel: bert_forward.26
$region0: #{bert_forward.26}
  #allocation0 [shape = 'u32[]', space=smem, size = 0x4, offset = 0x4, fixed_abs, tag = 'smem constant byte address 0x4 - core index']
  #allocation1 [shape = 'u32[144,128]{1,0:T(1,128)}', space=vmem, size = 0x12000, scoped, tag = 'internal scratch']
  #allocation2 [shape = 'f32[8,128]{1,0:T(8,128)}', space=vmem, size = 0x1000, scoped, tag = 'scratch operand']
  %s0 = inlined_call_operand.vmem [shape: bf16[8,128], index: 0, kind: input, shape index: {}]
  %s1 = inlined_call_operand.vmem [shape: bf16[128,128], index: 1, kind: input, shape index: {}]
  %s2 = inlined_call_operand.vmem [shape: f32[1,128], index: 2, kind: input, shape index: {}]
  %s3 = inlined_call_operand.vmem [shape: bf16[8,128], index: 3, kind: output, shape index: {}]
  %s4 = sld [smem:[#allocation0]]
  $region30: #{bert_forward.26} parent=0
    _
  %s6 = ssub.s32 1, %s4
  %s7 = scalar_select 0, %s6, %s4
  // Predicated region
  $region2: #{bert_forward.26} parent=0 // pred_check
    _
  $region3: #{bert_forward.26} parent=0 // pred_check_branch
    %9 = sbr.rel (0) target = $region5
  $region4: #{bert_forward.26} parent=0 // pred_region
    _
  $region5: #{bert_forward.26} parent=0 // pred_fallthru
    _
  // Predicated region
  $region6: #{bert_forward.26} parent=0 // pred_check
    _
  $region7: #{bert_forward.26} parent=0 // pred_check_branch
    %11 = sbr.rel (0) target = $region9
  $region8: #{bert_forward.26} parent=0 // pred_region
    _
  $region9: #{bert_forward.26} parent=0 // pred_fallthru
    _
  // Predicated region
  $region10: #{bert_forward.26} parent=0 // pred_check
    _
  $region11: #{bert_forward.26} parent=0 // pred_check_branch
    %13 = sbr.rel (0) target = $region13
  $region12: #{bert_forward.26} parent=0 // pred_region
    _
  $region13: #{bert_forward.26} parent=0 // pred_fallthru
    _
  %p15 = scmp.eq.s32.totalorder 0, 0
  // Predicated region
  $region14: #{bert_forward.26} parent=0 // pred_check
    %p16 = pneg %p15
  $region15: #{bert_forward.26} parent=0 // pred_check_branch
    %18 = sbr.rel (%p16) target = $region17
  $region16: #{bert_forward.26} parent=0 // pred_region
    %19 = vst [vmem:[#allocation2] sm:$0xff] 0.0
  $region17: #{bert_forward.26} parent=0 // pred_fallthru
    _
  %v20 = vld [vmem:[#allocation2] sm:$0xff]
  %v21 = vld [vmem:[%s0] sm:$0xf]
  %v22 = vld [vmem:[%s1] sm:$0xf]
  %v23 = vld [vmem:[%s1 + $0x4] sm:$0xf]
  %v24 = vld [vmem:[%s1 + $0x8] sm:$0xf]
  %v25 = vld [vmem:[%s1 + $0xc] sm:$0xf]
  %v26 = vld [vmem:[%s1 + $0x10] sm:$0xf]
  %v27 = vld [vmem:[%s1 + $0x14] sm:$0xf]
  %v28 = vld [vmem:[%s1 + $0x18] sm:$0xf]
  %v29 = vld [vmem:[%s1 + $0x1c] sm:$0xf]
  %v30 = vld [vmem:[%s1 + $0x20] sm:$0xf]
  %v31 = vld [vmem:[%s1 + $0x24] sm:$0xf]
  %v32 = vld [vmem:[%s1 + $0x28] sm:$0xf]
  %v33 = vld [vmem:[%s1 + $0x2c] sm:$0xf]
  %v34 = vld [vmem:[%s1 + $0x30] sm:$0xf]
  %v35 = vld [vmem:[%s1 + $0x34] sm:$0xf]
  %v36 = vld [vmem:[%s1 + $0x38] sm:$0xf]
  %v37 = vld [vmem:[%s1 + $0x3c] sm:$0xf]
  %v54 = vunpack.c.l.b16 %v22
  %v55 = vunpack.c.l.b16 %v23
  %v56 = vunpack.c.l.b16 %v24
  %v57 = vunpack.c.l.b16 %v25
  %v58 = vunpack.c.l.b16 %v26
  %v59 = vunpack.c.l.b16 %v27
  %v60 = vunpack.c.l.b16 %v28
  %v61 = vunpack.c.l.b16 %v29
  %v62 = vunpack.c.l.b16 %v30
  %v63 = vunpack.c.l.b16 %v31
  %v64 = vunpack.c.l.b16 %v32
  %v65 = vunpack.c.l.b16 %v33
  %v66 = vunpack.c.l.b16 %v34
  %v67 = vunpack.c.l.b16 %v35
  %v68 = vunpack.c.l.b16 %v36
  %v69 = vunpack.c.l.b16 %v37
  %v70 = vpack.c.b16 %v55, %v54
  %v71 = vpack.c.b16 %v57, %v56
  %v72 = vpack.c.b16 %v59, %v58
  %v73 = vpack.c.b16 %v61, %v60
  %v74 = vpack.c.b16 %v63, %v62
  %v75 = vpack.c.b16 %v65, %v64
  %v76 = vpack.c.b16 %v67, %v66
  %v77 = vpack.c.b16 %v69, %v68
  %86 = vmatprep.subr.bf16.mxu0 0
  %87 = vmatpush1.bf16.msra.mxu0 %v70
  %88 = vmatprep.subr.bf16.mxu0 0
  %89 = vmatpush1.bf16.msra.mxu0 %v71
  %90 = vmatprep.subr.bf16.mxu0 0
  %91 = vmatpush1.bf16.msra.mxu0 %v72
  %92 = vmatprep.subr.bf16.mxu0 0
  %93 = vmatpush1.bf16.msra.mxu0 %v73
  %94 = vmatprep.subr.bf16.mxu0 0
  %95 = vmatpush1.bf16.msra.mxu0 %v74
  %96 = vmatprep.subr.bf16.mxu0 0
  %97 = vmatpush1.bf16.msra.mxu0 %v75
  %98 = vmatprep.subr.bf16.mxu0 0
  %99 = vmatpush1.bf16.msra.mxu0 %v76
  %100 = vmatprep.subr.bf16.mxu0 0
  %101 = vmatpush1.bf16.msra.mxu0 %v77
  %102 = vmatprep.subr.bf16.mxu0 0
  %103 = vmatpush1.bf16.msra.mxu0 0
  %104 = vmatprep.subr.bf16.mxu0 0
  %105 = vmatpush1.bf16.msra.mxu0 0
  %106 = vmatprep.subr.bf16.mxu0 0
  %107 = vmatpush1.bf16.msra.mxu0 0
  %108 = vmatprep.subr.bf16.mxu0 0
  %109 = vmatpush1.bf16.msra.mxu0 0
  %110 = vmatprep.subr.bf16.mxu0 0
  %111 = vmatpush1.bf16.msra.mxu0 0
  %112 = vmatprep.subr.bf16.mxu0 0
  %113 = vmatpush1.bf16.msra.mxu0 0
  %114 = vmatprep.subr.bf16.mxu0 0
  %115 = vmatpush1.bf16.msra.mxu0 0
  %116 = vmatprep.subr.bf16.mxu0 0
  %117 = vmatpush1.bf16.msra.mxu0 0
  %118 = vmatprep.mubr.bf16.mxu0 0
  %119 = vmatmul.mubr.bf16.gmra.mrb[0].mxu0 %v21
  %v120 = vpop.f32.mrb[0].mxu0
  %v121 = vadd.f32 0.0, %v120
  %v122 = vpop.f32.mrb[0].mxu0
  %v123 = vpop.f32.mrb[0].mxu0
  %v124 = vpop.f32.mrb[0].mxu0
  %125 = vdwg.mxu0
  %v126 = vadd.f32 %v20, %v121
  %127 = vst [vmem:[#allocation2] sm:$0xff] %v126
  // Predicated region
  $region18: #{bert_forward.26} parent=0 // pred_check
    %p128 = pneg %p15
  $region19: #{bert_forward.26} parent=0 // pred_check_branch
    %130 = sbr.rel (%p128) target = $region21
  $region20: #{bert_forward.26} parent=0 // pred_region
    %v131 = vld [vmem:[#allocation2] sm:$0xff]
    %v132 = vld [vmem:[%s2] sm:$0x1]
    %v134 = vlaneseq
    %v135 = vshrl.u32 %v134, 7
    %v136 = vsub.s32 0, %v135
    %v137 = vrot.slane %v132, %v136
    %v139 = vadd.f32 %v131, %v137
    %v140 = vtanh.pop %v139
    %v141 = vpack.c.bf16 %v140, %v140
    %142 = vst [vmem:[%s3] sm:$0xf] %v141
  $region21: #{bert_forward.26} parent=0 // pred_fallthru
    _
  // Predicated region
  $region22: #{bert_forward.26} parent=0 // pred_check
    _
  $region23: #{bert_forward.26} parent=0 // pred_check_branch
    %144 = sbr.rel (0) target = $region25
  $region24: #{bert_forward.26} parent=0 // pred_region
    _
  $region25: #{bert_forward.26} parent=0 // pred_fallthru
    _
  // Predicated region
  $region26: #{bert_forward.26} parent=0 // pred_check
    _
  $region27: #{bert_forward.26} parent=0 // pred_check_branch
    %146 = sbr.rel (0) target = $region29
  $region28: #{bert_forward.26} parent=0 // pred_region
    _
  $region29: #{bert_forward.26} parent=0 // pred_fallthru
    _

</llo_original>
